<compile_context>
chip_gen: v7x
topology: tpu7x:2x2x1
jax: 0.10.0
libtpu: 0.0.40
codegen_flags: <defaults>
</compile_context>

<pallas_src>
import numpy as np
import jax
import jax.numpy as jnp
from jax.experimental import pallas as pl
from jax.experimental.pallas import tpu as pltpu


# ---------------------------------------------------------------------------
# batch-block selection: fill the upsample matmul's M dimension (~256 MXU rows)
# while keeping >= 2 grid steps when possible (v7x has 2 TensorCores).
# ---------------------------------------------------------------------------
def _pick_batch_block(n, k, target_rows=256):
    b = max(1, min(n, target_rows // max(k, 1)))
    while n % b:
        b -= 1
    if n // b < 2:
        for cand in range(b - 1, 0, -1):
            if n % cand == 0 and n // cand >= 2:
                b = cand
                break
    return b


# ---------------------------------------------------------------------------
# Pallas kernel (one grid step = B batch items)
#   per item: 1x1 conv (per-pixel fc) + class softmax  -> sm_t   [K, hw]
#             global avg pool + fc + softmax           -> cls    [K, 1]
#             class-weighted pre-upsample row          -> wv     [1, hw]
#   packed [B*K + B, hw] @ R2^T [hw, H*W] (bf16, one MXU matmul)
#     -> cmap [B, K, H*W] and weighted_cmap [B, 1, H*W], lane-dense, NCHW order
# ---------------------------------------------------------------------------
def _make_cam_kernel(B, K, hw, hw_out):
    inv_hw = 1.0 / float(hw)

    def cam_kernel(feat_ref, wck_ref, bc_ref, r2t_ref,
                   cmap_ref, cls_ref, wmap_ref, packed_ref):
        # feat_ref : [B, C, hw]    bf16   (channels on sublanes, hw on lanes)
        # wck_ref  : [K, C]        bf16   fc weight (shared with the 1x1 conv)
        # bc_ref   : [K, 1]        f32    fc bias as a column
        # r2t_ref  : [hw, hw_out]  bf16   transposed bilinear interpolation matrix
        # cmap_ref : [B, K, hw_out] f32 ; cls_ref : [B, K, 1] f32 ; wmap_ref : [B, 1, hw_out] f32
        # packed_ref : VMEM [B*K + B, hw] f32 scratch
        wck = wck_ref[...]
        bc = bc_ref[...]

        for b in range(B):                      # static, unrolled (B is small)
            fm_t = feat_ref[b]                  # [C, hw] bf16
            # 1x1 conv == per-pixel fc, class-major: g_t[k, i] = sum_c W[k,c] fm[c,i]
            g_t = jnp.dot(wck, fm_t, preferred_element_type=jnp.float32)   # [K, hw] f32

            # per-pixel softmax over classes (classes on the sublane axis)
            logits = g_t + bc
            m = jnp.max(logits, axis=0, keepdims=True)
            e = jnp.exp(logits - m)
            sm_t = e * pl.reciprocal(jnp.sum(e, axis=0, keepdims=True),
                                     approx=True)                           # [K, hw]

            # adaptive_avg_pool2d(1) + fc + softmax; pool after the matmul by
            # linearity: mean_i g_t[k,i] == W[k,:] @ mean_i fm[:,i]
            cl = jnp.sum(g_t, axis=1, keepdims=True) * inv_hw + bc          # [K, 1]
            ce = jnp.exp(cl - jnp.max(cl, axis=0, keepdims=True))
            cls = ce * pl.reciprocal(jnp.sum(ce, axis=0, keepdims=True),
                                     approx=True)                           # [K, 1]
            cls_ref[b] = cls

            # fold the class-weighted map into the upsample matmul (linearity):
            # weighted_cmap = upsample(sum_k cls_k * sm_k) — one cheap [1, hw] row
            wv = jnp.sum(sm_t * cls, axis=0, keepdims=True)                 # [1, hw]

            packed_ref[b * K:(b + 1) * K, :] = sm_t
            packed_ref[B * K + b:B * K + b + 1, :] = wv

        # ONE lane-dense upsample matmul for the whole batch block (bf16 in, f32 acc)
        up = jnp.dot(packed_ref[...].astype(jnp.bfloat16), r2t_ref[...],
                     preferred_element_type=jnp.float32)                    # [B*K+B, hw_out]
        for b in range(B):
            cmap_ref[b] = up[b * K:(b + 1) * K, :]                          # [K, hw_out]
            wmap_ref[b] = up[B * K + b:B * K + b + 1, :]                    # [1, hw_out]

    return cam_kernel


def cam_head_pallas(feat_t, wck, bc_col, r2t, *, batch_block=None):
    """feat_t [N,C,hw] bf16, wck [K,C] bf16, bc_col [K,1] f32, r2t [hw,hw_out] bf16."""
    N, C, hw = feat_t.shape
    K = wck.shape[0]
    hw_out = r2t.shape[1]
    B = _pick_batch_block(N, K) if batch_block is None else batch_block
    assert N % B == 0

    kernel = _make_cam_kernel(B, K, hw, hw_out)
    out_shape = (
        jax.ShapeDtypeStruct((N, K, hw_out), jnp.float32),   # cmap (class-major, flat HW)
        jax.ShapeDtypeStruct((N, K, 1), jnp.float32),        # cls_score (column)
        jax.ShapeDtypeStruct((N, 1, hw_out), jnp.float32),   # weighted cmap (flat HW)
    )

    # advisory cost hint for XLA scheduling around the backbone
    cost = pl.CostEstimate(
        flops=2 * N * (K * C * hw + (K + 1) * hw * hw_out),
        transcendentals=N * (K * hw + K),
        bytes_accessed=(feat_t.size * 2 + wck.size * 2 + bc_col.size * 4 + r2t.size * 2
                        + N * K * hw_out * 4 + N * K * 4 + N * hw_out * 4),
    )

    # VMEM: feat block (double-buffered) + single-buffered constants + output blocks
    # (double-buffered) + packing scratch, with generous headroom; safe on all gens.
    vmem_est = (2 * B * C * hw * 2
                + (K * C * 2 + K * 4 + hw * hw_out * 2)
                + 2 * (B * K * hw_out * 4 + B * K * 4 + B * hw_out * 4)
                + (B * K + B) * hw * 4)
    vmem_limit = int(min(max(4 * vmem_est + (8 << 20), 32 << 20), 64 << 20))

    def build(single_buffer_consts):
        const_kw = ({"pipeline_mode": pl.Buffered(buffer_count=1)}
                    if single_buffer_consts else {})
        grid_spec = pltpu.PrefetchScalarGridSpec(
            num_scalar_prefetch=0,
            grid=(N // B,),
            in_specs=[
                pl.BlockSpec((B, C, hw), lambda n: (n, 0, 0)),
                pl.BlockSpec((K, C), lambda n: (0, 0), **const_kw),
                pl.BlockSpec((K, 1), lambda n: (0, 0), **const_kw),
                pl.BlockSpec((hw, hw_out), lambda n: (0, 0), **const_kw),
            ],
            out_specs=[
                pl.BlockSpec((B, K, hw_out), lambda n: (n, 0, 0)),
                pl.BlockSpec((B, K, 1), lambda n: (n, 0, 0)),
                pl.BlockSpec((B, 1, hw_out), lambda n: (n, 0, 0)),
            ],
            scratch_shapes=[pltpu.VMEM((B * K + B, hw), jnp.float32)],
        )
        return pl.pallas_call(
            kernel,
            out_shape=out_shape,
            grid_spec=grid_spec,
            cost_estimate=cost,
            compiler_params=pltpu.CompilerParams(
                dimension_semantics=("parallel",),      # batch blocks are independent
                vmem_limit_bytes=vmem_limit,
            ),
        )

    try:
        return build(True)(feat_t, wck, bc_col, r2t)
    except Exception:
        # TODO(synk): pl.Buffered(1) single-buffering of grid-invariant blocks is not
        # available on this jax version; fall back to default double buffering.
        return build(False)(feat_t, wck, bc_col, r2t)


# ---------------------------------------------------------------------------
# Glue (plain JAX / numpy): backbone stand-in, bilinear matrices, layout moves
# ---------------------------------------------------------------------------
def _backbone_standin(x, params):
    # TODO(synk): the real backbone (`model_to_convert` children[:-1], a DenseNet
    # feature extractor) is an external module passed into CAM; replaced by a
    # deterministic stand-in (2x2 avg-pool stride 2 -> 1x1 conv -> ReLU) so the
    # CAM head has a lower-resolution feature map to bilinearly upsample from.
    N, Cin, H, W = x.shape
    xh = jnp.transpose(x, (0, 2, 3, 1))                        # NCHW -> NHWC
    h, w = H // 2, W // 2
    p = xh.reshape(N, h, 2, w, 2, Cin).mean(axis=(2, 4))       # [N, h, w, Cin]
    feat = jax.nn.relu(p @ params["backbone_w"] + params["backbone_b"])
    return feat                                                # [N, h, w, C]


def bilinear_matrix(out_size, in_size):
    # PyTorch F.interpolate(mode='bilinear', align_corners=False) row weights.
    i = np.arange(out_size, dtype=np.float64)
    src = (i + 0.5) * (in_size / out_size) - 0.5
    src = np.maximum(src, 0.0)
    i0 = np.minimum(np.floor(src).astype(np.int64), in_size - 1)
    i1 = np.minimum(i0 + 1, in_size - 1)
    w1 = src - i0
    w0 = 1.0 - w1
    M = np.zeros((out_size, in_size), dtype=np.float64)
    np.add.at(M, (np.arange(out_size), i0), w0)
    np.add.at(M, (np.arange(out_size), i1), w1)
    return M.astype(np.float32)


def cam_forward(x, params):
    """Full CAM.forward: returns (cmap [N,K,H,W], cls_score [N,K], weighted_cmap [N,H,W])."""
    N, Cin, H, W = x.shape
    feat = _backbone_standin(x, params)                        # [N, h, w, C] f32
    _, h, w, C = feat.shape
    K = params["fc_w"].shape[0]

    # class-major-friendly layout: channels on sublanes, flattened hw on lanes
    # (cheap XLA-side transpose fused into the backbone epilogue; avoids an
    #  in-kernel XLU transpose); bf16 halves the feature-map DMA.
    feat_t = jnp.transpose(feat, (0, 3, 1, 2)).reshape(N, C, h * w).astype(jnp.bfloat16)
    wck = jnp.asarray(params["fc_w"], jnp.bfloat16)            # [K, C] (PyTorch fc layout)
    bc_col = jnp.asarray(params["fc_b"], jnp.float32).reshape(K, 1)

    # transposed fused interpolation matrix R2^T = kron(Rh, Rw)^T : [h*w, H*W], bf16.
    # TODO(synk): at realistic CAM resolutions (h=w=14 -> H=W=224) replace the fused
    # Kronecker matrix with separable Rh/Rw matmuls (VMEM ~39MB -> ~50KB, ~13x fewer
    # FLOPs) and add a K-tiling grid axis for large class counts.
    r2t = jnp.asarray(np.kron(bilinear_matrix(H, h), bilinear_matrix(W, w)).T,
                      jnp.float32).astype(jnp.bfloat16)

    cmap_t, cls3, wmap_flat = cam_head_pallas(feat_t, wck, bc_col, r2t)

    cmap = cmap_t.reshape(N, K, H, W)          # already class-major -> free reshape to NCHW
    cls_score = cls3.reshape(N, K)
    weighted_cmap = wmap_flat.reshape(N, H, W)
    return cmap, cls_score, weighted_cmap


def cam_forward_reference(x, params):
    """Pure-JAX f32 reference of the same math (for correctness check)."""
    N, Cin, H, W = x.shape
    feat = _backbone_standin(x, params)
    _, h, w, C = feat.shape
    wc = params["fc_w"].T
    bc = params["fc_b"][None, :]
    feat_flat = feat.reshape(N, h * w, C)
    sm = jax.nn.softmax(feat_flat @ wc + bc, axis=-1)                 # [N, hw, K]
    cls = jax.nn.softmax(feat_flat.mean(axis=1) @ wc + bc, axis=-1)   # [N, K]
    r2 = jnp.asarray(np.kron(bilinear_matrix(H, h), bilinear_matrix(W, w)), jnp.float32)
    up = jnp.einsum("oh,nhk->nok", r2, sm)                            # [N, H*W, K]
    cmap = up.reshape(N, H, W, -1).transpose(0, 3, 1, 2)
    weighted = (up * cls[:, None, :]).sum(-1).reshape(N, H, W)
    return cmap, cls, weighted


if __name__ == "__main__":
    # small demo shapes; batch=4 so the kernel exercises both the B=2-items-per-step
    # packing and a 2-step (megacore-splittable) grid.
    N, Cin, H, W = 4, 4, 16, 16   # input image-like tensor (NCHW, as in PyTorch)
    C, K = 32, 8                  # backbone feature channels, num classes

    key = jax.random.PRNGKey(0)
    k1, k2, k3, k4, k5 = jax.random.split(key, 5)
    params = {
        "backbone_w": jax.random.normal(k1, (Cin, C), jnp.float32) * 0.5,
        "backbone_b": jax.random.normal(k2, (C,), jnp.float32) * 0.1,
        "fc_w": jax.random.normal(k3, (K, C), jnp.float32) * 0.2,   # fc.weight [out, in]
        "fc_b": jax.random.normal(k4, (K,), jnp.float32) * 0.1,     # fc.bias   [out]
    }
    x = jax.random.normal(k5, (N, Cin, H, W), jnp.float32)

    cmap, cls_score, weighted_cmap = cam_forward(x, params)
    jax.block_until_ready((cmap, cls_score, weighted_cmap))

    # correctness check vs. pure-f32 reference; tolerance loosened (per perf review)
    # because the kernel uses bf16 matmul inputs and approx EUP reciprocals.
    cmap_r, cls_r, wmap_r = cam_forward_reference(x, params)
    np.testing.assert_allclose(np.asarray(cls_score), np.asarray(cls_r), rtol=4e-2, atol=4e-2)
    np.testing.assert_allclose(np.asarray(cmap), np.asarray(cmap_r), rtol=4e-2, atol=4e-2)
    np.testing.assert_allclose(np.asarray(weighted_cmap), np.asarray(wmap_r), rtol=4e-2, atol=4e-2)

    assert cmap.shape == (N, K, H, W)
    assert cls_score.shape == (N, K)
    assert weighted_cmap.shape == (N, H, W)
    print("KERNEL_OK")
</pallas_src>

<mosaic_0001>
module attributes {stable_mosaic.version = 11 : i64} {
  func.func @cam_kernel(%arg0: i32, %arg1: memref<2x32x64xbf16, #tpu.memory_space<vmem>>, %arg2: memref<8x32xbf16, #tpu.memory_space<vmem>>, %arg3: memref<8x1xf32, #tpu.memory_space<vmem>>, %arg4: memref<64x256xbf16, #tpu.memory_space<vmem>>, %arg5: memref<2x8x256xf32, #tpu.memory_space<vmem>>, %arg6: memref<2x8x1xf32, #tpu.memory_space<vmem>>, %arg7: memref<2x1x256xf32, #tpu.memory_space<vmem>>, %arg8: memref<18x64xf32, #tpu.memory_space<vmem>>) attributes {dimension_semantics = [#tpu.dimension_semantics<parallel>], iteration_bounds = array<i64: 2>, scalar_prefetch = 0 : i64, scratch_operands = 1 : i64, tpu.core_type = #tpu.core_type<tc>, window_params = [{transform_indices = @transform_0, window_bounds = array<i64: 2, 32, 64>}, {pipeline_mode = #tpu.pipeline_mode<synchronous>, transform_indices = @transform_1, window_bounds = array<i64: 8, 32>}, {pipeline_mode = #tpu.pipeline_mode<synchronous>, transform_indices = @transform_2, window_bounds = array<i64: 8, 1>}, {pipeline_mode = #tpu.pipeline_mode<synchronous>, transform_indices = @transform_3, window_bounds = array<i64: 64, 256>}, {transform_indices = @transform_4, window_bounds = array<i64: 2, 8, 256>}, {transform_indices = @transform_5, window_bounds = array<i64: 2, 8, 1>}, {transform_indices = @transform_6, window_bounds = array<i64: 2, 1, 256>}]} {
    %c0 = arith.constant 0 : index
    %c0_0 = arith.constant 0 : index
    %0 = vector.load %arg2[%c0, %c0_0] : memref<8x32xbf16, #tpu.memory_space<vmem>>, vector<8x32xbf16>
    %c0_1 = arith.constant 0 : index
    %c0_2 = arith.constant 0 : index
    %1 = vector.load %arg3[%c0_1, %c0_2] : memref<8x1xf32, #tpu.memory_space<vmem>>, vector<8x1xf32>
    %c0_3 = arith.constant 0 : index
    %c0_4 = arith.constant 0 : index
    %c0_5 = arith.constant 0 : index
    %2 = vector.load %arg1[%c0_3, %c0_4, %c0_5] : memref<2x32x64xbf16, #tpu.memory_space<vmem>>, vector<1x32x64xbf16>
    %3 = vector.shape_cast %2 : vector<1x32x64xbf16> to vector<32x64xbf16>
    %cst = arith.constant dense<0.000000e+00> : vector<8x64xf32>
    %4 = tpu.matmul %0, %3, %cst {dimension_numbers = #tpu.dot_dimension_numbers<[1], [0], [0], [1], [0, 0, 1, 1], [], []>} : vector<8x32xbf16>, vector<32x64xbf16>, vector<8x64xf32> -> vector<8x64xf32>
    %5 = vector.broadcast %1 : vector<8x1xf32> to vector<8x64xf32>
    %6 = arith.addf %4, %5 : vector<8x64xf32>
    %cst_6 = arith.constant dense<0xFF800000> : vector<64xf32>
    %7 = vector.multi_reduction <maximumf>, %6, %cst_6 [0] : vector<8x64xf32> to vector<64xf32>
    %8 = vector.shape_cast %7 : vector<64xf32> to vector<1x64xf32>
    %9 = vector.broadcast %8 : vector<1x64xf32> to vector<8x64xf32>
    %10 = arith.subf %6, %9 : vector<8x64xf32>
    %11 = math.exp %10 : vector<8x64xf32>
    %cst_7 = arith.constant dense<0.000000e+00> : vector<64xf32>
    %12 = vector.multi_reduction <add>, %11, %cst_7 [0] : vector<8x64xf32> to vector<64xf32>
    %13 = vector.shape_cast %12 : vector<64xf32> to vector<1x64xf32>
    %14 = tpu.reciprocal %13 {approx = true} : vector<1x64xf32> -> vector<1x64xf32>
    %15 = vector.broadcast %14 : vector<1x64xf32> to vector<8x64xf32>
    %16 = arith.mulf %11, %15 : vector<8x64xf32>
    %cst_8 = arith.constant dense<0.000000e+00> : vector<8xf32>
    %17 = vector.multi_reduction <add>, %4, %cst_8 [1] : vector<8x64xf32> to vector<8xf32>
    %18 = vector.shape_cast %17 : vector<8xf32> to vector<8x1xf32>
    %cst_9 = arith.constant 1.562500e-02 : f32
    %19 = vector.broadcast %cst_9 : f32 to vector<8x1xf32>
    %20 = arith.mulf %18, %19 : vector<8x1xf32>
    %21 = arith.addf %20, %1 : vector<8x1xf32>
    %cst_10 = arith.constant dense<0xFF800000> : vector<1xf32>
    %22 = vector.multi_reduction <maximumf>, %21, %cst_10 [0] : vector<8x1xf32> to vector<1xf32>
    %23 = vector.shape_cast %22 : vector<1xf32> to vector<1x1xf32>
    %24 = vector.broadcast %23 : vector<1x1xf32> to vector<8x1xf32>
    %25 = arith.subf %21, %24 : vector<8x1xf32>
    %26 = math.exp %25 : vector<8x1xf32>
    %cst_11 = arith.constant dense<0.000000e+00> : vector<1xf32>
    %27 = vector.multi_reduction <add>, %26, %cst_11 [0] : vector<8x1xf32> to vector<1xf32>
    %28 = vector.shape_cast %27 : vector<1xf32> to vector<1x1xf32>
    %29 = tpu.reciprocal %28 {approx = true} : vector<1x1xf32> -> vector<1x1xf32>
    %30 = vector.broadcast %29 : vector<1x1xf32> to vector<8x1xf32>
    %31 = arith.mulf %26, %30 : vector<8x1xf32>
    %c0_12 = arith.constant 0 : index
    %c0_13 = arith.constant 0 : index
    %c0_14 = arith.constant 0 : index
    %32 = vector.load %arg6[%c0_12, %c0_13, %c0_14] : memref<2x8x1xf32, #tpu.memory_space<vmem>>, vector<1x8x1xf32>
    %33 = vector.shape_cast %32 : vector<1x8x1xf32> to vector<8x1xf32>
    %34 = vector.shape_cast %31 : vector<8x1xf32> to vector<1x8x1xf32>
    tpu.vector_store %arg6[%c0_12, %c0_13, %c0_14], %34 {strides = array<i32>} : memref<2x8x1xf32, #tpu.memory_space<vmem>>, vector<1x8x1xf32>,
    %35 = vector.broadcast %31 : vector<8x1xf32> to vector<8x64xf32>
    %36 = arith.mulf %16, %35 : vector<8x64xf32>
    %cst_15 = arith.constant dense<0.000000e+00> : vector<64xf32>
    %37 = vector.multi_reduction <add>, %36, %cst_15 [0] : vector<8x64xf32> to vector<64xf32>
    %38 = vector.shape_cast %37 : vector<64xf32> to vector<1x64xf32>
    %c0_16 = arith.constant 0 : index
    %c0_17 = arith.constant 0 : index
    %39 = vector.load %arg8[%c0_16, %c0_17] : memref<18x64xf32, #tpu.memory_space<vmem>>, vector<8x64xf32>
    tpu.vector_store %arg8[%c0_16, %c0_17], %16 {strides = array<i32>} : memref<18x64xf32, #tpu.memory_space<vmem>>, vector<8x64xf32>,
    %c16 = arith.constant 16 : index
    %c0_18 = arith.constant 0 : index
    %40 = vector.load %arg8[%c16, %c0_18] : memref<18x64xf32, #tpu.memory_space<vmem>>, vector<1x64xf32>
    tpu.vector_store %arg8[%c16, %c0_18], %38 {strides = array<i32>} : memref<18x64xf32, #tpu.memory_space<vmem>>, vector<1x64xf32>,
    %c1 = arith.constant 1 : index
    %c0_19 = arith.constant 0 : index
    %c0_20 = arith.constant 0 : index
    %41 = vector.load %arg1[%c1, %c0_19, %c0_20] : memref<2x32x64xbf16, #tpu.memory_space<vmem>>, vector<1x32x64xbf16>
    %42 = vector.shape_cast %41 : vector<1x32x64xbf16> to vector<32x64xbf16>
    %cst_21 = arith.constant dense<0.000000e+00> : vector<8x64xf32>
    %43 = tpu.matmul %0, %42, %cst_21 {dimension_numbers = #tpu.dot_dimension_numbers<[1], [0], [0], [1], [0, 0, 1, 1], [], []>} : vector<8x32xbf16>, vector<32x64xbf16>, vector<8x64xf32> -> vector<8x64xf32>
    %44 = vector.broadcast %1 : vector<8x1xf32> to vector<8x64xf32>
    %45 = arith.addf %43, %44 : vector<8x64xf32>
    %cst_22 = arith.constant dense<0xFF800000> : vector<64xf32>
    %46 = vector.multi_reduction <maximumf>, %45, %cst_22 [0] : vector<8x64xf32> to vector<64xf32>
    %47 = vector.shape_cast %46 : vector<64xf32> to vector<1x64xf32>
    %48 = vector.broadcast %47 : vector<1x64xf32> to vector<8x64xf32>
    %49 = arith.subf %45, %48 : vector<8x64xf32>
    %50 = math.exp %49 : vector<8x64xf32>
    %cst_23 = arith.constant dense<0.000000e+00> : vector<64xf32>
    %51 = vector.multi_reduction <add>, %50, %cst_23 [0] : vector<8x64xf32> to vector<64xf32>
    %52 = vector.shape_cast %51 : vector<64xf32> to vector<1x64xf32>
    %53 = tpu.reciprocal %52 {approx = true} : vector<1x64xf32> -> vector<1x64xf32>
    %54 = vector.broadcast %53 : vector<1x64xf32> to vector<8x64xf32>
    %55 = arith.mulf %50, %54 : vector<8x64xf32>
    %cst_24 = arith.constant dense<0.000000e+00> : vector<8xf32>
    %56 = vector.multi_reduction <add>, %43, %cst_24 [1] : vector<8x64xf32> to vector<8xf32>
    %57 = vector.shape_cast %56 : vector<8xf32> to vector<8x1xf32>
    %cst_25 = arith.constant 1.562500e-02 : f32
    %58 = vector.broadcast %cst_25 : f32 to vector<8x1xf32>
    %59 = arith.mulf %57, %58 : vector<8x1xf32>
    %60 = arith.addf %59, %1 : vector<8x1xf32>
    %cst_26 = arith.constant dense<0xFF800000> : vector<1xf32>
    %61 = vector.multi_reduction <maximumf>, %60, %cst_26 [0] : vector<8x1xf32> to vector<1xf32>
    %62 = vector.shape_cast %61 : vector<1xf32> to vector<1x1xf32>
    %63 = vector.broadcast %62 : vector<1x1xf32> to vector<8x1xf32>
    %64 = arith.subf %60, %63 : vector<8x1xf32>
    %65 = math.exp %64 : vector<8x1xf32>
    %cst_27 = arith.constant dense<0.000000e+00> : vector<1xf32>
    %66 = vector.multi_reduction <add>, %65, %cst_27 [0] : vector<8x1xf32> to vector<1xf32>
    %67 = vector.shape_cast %66 : vector<1xf32> to vector<1x1xf32>
    %68 = tpu.reciprocal %67 {approx = true} : vector<1x1xf32> -> vector<1x1xf32>
    %69 = vector.broadcast %68 : vector<1x1xf32> to vector<8x1xf32>
    %70 = arith.mulf %65, %69 : vector<8x1xf32>
    %c1_28 = arith.constant 1 : index
    %c0_29 = arith.constant 0 : index
    %c0_30 = arith.constant 0 : index
    %71 = vector.load %arg6[%c1_28, %c0_29, %c0_30] : memref<2x8x1xf32, #tpu.memory_space<vmem>>, vector<1x8x1xf32>
    %72 = vector.shape_cast %71 : vector<1x8x1xf32> to vector<8x1xf32>
    %73 = vector.shape_cast %70 : vector<8x1xf32> to vector<1x8x1xf32>
    tpu.vector_store %arg6[%c1_28, %c0_29, %c0_30], %73 {strides = array<i32>} : memref<2x8x1xf32, #tpu.memory_space<vmem>>, vector<1x8x1xf32>,
    %74 = vector.broadcast %70 : vector<8x1xf32> to vector<8x64xf32>
    %75 = arith.mulf %55, %74 : vector<8x64xf32>
    %cst_31 = arith.constant dense<0.000000e+00> : vector<64xf32>
    %76 = vector.multi_reduction <add>, %75, %cst_31 [0] : vector<8x64xf32> to vector<64xf32>
    %77 = vector.shape_cast %76 : vector<64xf32> to vector<1x64xf32>
    %c8 = arith.constant 8 : index
    %c0_32 = arith.constant 0 : index
    %78 = vector.load %arg8[%c8, %c0_32] : memref<18x64xf32, #tpu.memory_space<vmem>>, vector<8x64xf32>
    tpu.vector_store %arg8[%c8, %c0_32], %55 {strides = array<i32>} : memref<18x64xf32, #tpu.memory_space<vmem>>, vector<8x64xf32>,
    %c17 = arith.constant 17 : index
    %c0_33 = arith.constant 0 : index
    %79 = vector.load %arg8[%c17, %c0_33] : memref<18x64xf32, #tpu.memory_space<vmem>>, vector<1x64xf32>
    tpu.vector_store %arg8[%c17, %c0_33], %77 {strides = array<i32>} : memref<18x64xf32, #tpu.memory_space<vmem>>, vector<1x64xf32>,
    %c0_34 = arith.constant 0 : index
    %c0_35 = arith.constant 0 : index
    %80 = vector.load %arg8[%c0_34, %c0_35] : memref<18x64xf32, #tpu.memory_space<vmem>>, vector<18x64xf32>
    %81 = arith.truncf %80 : vector<18x64xf32> to vector<18x64xbf16>
    %c0_36 = arith.constant 0 : index
    %c0_37 = arith.constant 0 : index
    %82 = vector.load %arg4[%c0_36, %c0_37] : memref<64x256xbf16, #tpu.memory_space<vmem>>, vector<64x256xbf16>
    %cst_38 = arith.constant dense<0.000000e+00> : vector<18x256xf32>
    %83 = tpu.matmul %81, %82, %cst_38 {dimension_numbers = #tpu.dot_dimension_numbers<[1], [0], [0], [1], [0, 0, 1, 1], [], []>} : vector<18x64xbf16>, vector<64x256xbf16>, vector<18x256xf32> -> vector<18x256xf32>
    %84 = vector.extract_strided_slice %83 {offsets = [0, 0], sizes = [8, 256], strides = [1, 1]} : vector<18x256xf32> to vector<8x256xf32>
    %c0_39 = arith.constant 0 : index
    %c0_40 = arith.constant 0 : index
    %c0_41 = arith.constant 0 : index
    %85 = vector.load %arg5[%c0_39, %c0_40, %c0_41] : memref<2x8x256xf32, #tpu.memory_space<vmem>>, vector<1x8x256xf32>
    %86 = vector.shape_cast %85 : vector<1x8x256xf32> to vector<8x256xf32>
    %87 = vector.shape_cast %84 : vector<8x256xf32> to vector<1x8x256xf32>
    tpu.vector_store %arg5[%c0_39, %c0_40, %c0_41], %87 {strides = array<i32>} : memref<2x8x256xf32, #tpu.memory_space<vmem>>, vector<1x8x256xf32>,
    %88 = vector.extract_strided_slice %83 {offsets = [16, 0], sizes = [1, 256], strides = [1, 1]} : vector<18x256xf32> to vector<1x256xf32>
    %c0_42 = arith.constant 0 : index
    %c0_43 = arith.constant 0 : index
    %c0_44 = arith.constant 0 : index
    %89 = vector.load %arg7[%c0_42, %c0_43, %c0_44] : memref<2x1x256xf32, #tpu.memory_space<vmem>>, vector<1x1x256xf32>
    %90 = vector.shape_cast %89 : vector<1x1x256xf32> to vector<1x256xf32>
    %91 = vector.shape_cast %88 : vector<1x256xf32> to vector<1x1x256xf32>
    tpu.vector_store %arg7[%c0_42, %c0_43, %c0_44], %91 {strides = array<i32>} : memref<2x1x256xf32, #tpu.memory_space<vmem>>, vector<1x1x256xf32>,
    %92 = vector.extract_strided_slice %83 {offsets = [8, 0], sizes = [8, 256], strides = [1, 1]} : vector<18x256xf32> to vector<8x256xf32>
    %c1_45 = arith.constant 1 : index
    %c0_46 = arith.constant 0 : index
    %c0_47 = arith.constant 0 : index
    %93 = vector.load %arg5[%c1_45, %c0_46, %c0_47] : memref<2x8x256xf32, #tpu.memory_space<vmem>>, vector<1x8x256xf32>
    %94 = vector.shape_cast %93 : vector<1x8x256xf32> to vector<8x256xf32>
    %95 = vector.shape_cast %92 : vector<8x256xf32> to vector<1x8x256xf32>
    tpu.vector_store %arg5[%c1_45, %c0_46, %c0_47], %95 {strides = array<i32>} : memref<2x8x256xf32, #tpu.memory_space<vmem>>, vector<1x8x256xf32>,
    %96 = vector.extract_strided_slice %83 {offsets = [17, 0], sizes = [1, 256], strides = [1, 1]} : vector<18x256xf32> to vector<1x256xf32>
    %c1_48 = arith.constant 1 : index
    %c0_49 = arith.constant 0 : index
    %c0_50 = arith.constant 0 : index
    %97 = vector.load %arg7[%c1_48, %c0_49, %c0_50] : memref<2x1x256xf32, #tpu.memory_space<vmem>>, vector<1x1x256xf32>
    %98 = vector.shape_cast %97 : vector<1x1x256xf32> to vector<1x256xf32>
    %99 = vector.shape_cast %96 : vector<1x256xf32> to vector<1x1x256xf32>
    tpu.vector_store %arg7[%c1_48, %c0_49, %c0_50], %99 {strides = array<i32>} : memref<2x1x256xf32, #tpu.memory_space<vmem>>, vector<1x1x256xf32>,
    return
  }
  func.func @transform_0(%arg0: i32) -> (i32, i32, i32) {
    %c0_i32 = arith.constant 0 : i32
    %c0_i32_0 = arith.constant 0 : i32
    %c0_i32_1 = arith.constant 0 : i32
    return %arg0, %c0_i32, %c0_i32_0 : i32, i32, i32
  }
  func.func @transform_1(%arg0: i32) -> (i32, i32) {
    %c0_i32 = arith.constant 0 : i32
    %c0_i32_0 = arith.constant 0 : i32
    %c0_i32_1 = arith.constant 0 : i32
    return %c0_i32, %c0_i32_0 : i32, i32
  }
  func.func @transform_2(%arg0: i32) -> (i32, i32) {
    %c0_i32 = arith.constant 0 : i32
    %c0_i32_0 = arith.constant 0 : i32
    %c0_i32_1 = arith.constant 0 : i32
    return %c0_i32, %c0_i32_0 : i32, i32
  }
  func.func @transform_3(%arg0: i32) -> (i32, i32) {
    %c0_i32 = arith.constant 0 : i32
    %c0_i32_0 = arith.constant 0 : i32
    %c0_i32_1 = arith.constant 0 : i32
    return %c0_i32, %c0_i32_0 : i32, i32
  }
  func.func @transform_4(%arg0: i32) -> (i32, i32, i32) {
    %c0_i32 = arith.constant 0 : i32
    %c0_i32_0 = arith.constant 0 : i32
    %c0_i32_1 = arith.constant 0 : i32
    return %arg0, %c0_i32, %c0_i32_0 : i32, i32, i32
  }
  func.func @transform_5(%arg0: i32) -> (i32, i32, i32) {
    %c0_i32 = arith.constant 0 : i32
    %c0_i32_0 = arith.constant 0 : i32
    %c0_i32_1 = arith.constant 0 : i32
    return %arg0, %c0_i32, %c0_i32_0 : i32, i32, i32
  }
  func.func @transform_6(%arg0: i32) -> (i32, i32, i32) {
    %c0_i32 = arith.constant 0 : i32
    %c0_i32_0 = arith.constant 0 : i32
    %c0_i32_1 = arith.constant 0 : i32
    return %arg0, %c0_i32, %c0_i32_0 : i32, i32, i32
  }
}

module attributes {stable_mosaic.version = 11 : i64} {
  func.func @cam_kernel(%arg0: i32, %arg1: memref<2x32x64xbf16, #tpu.memory_space<vmem>>, %arg2: memref<8x32xbf16, #tpu.memory_space<vmem>>, %arg3: memref<8x1xf32, #tpu.memory_space<vmem>>, %arg4: memref<64x256xbf16, #tpu.memory_space<vmem>>, %arg5: memref<2x8x256xf32, #tpu.memory_space<vmem>>, %arg6: memref<2x8x1xf32, #tpu.memory_space<vmem>>, %arg7: memref<2x1x256xf32, #tpu.memory_space<vmem>>, %arg8: memref<18x64xf32, #tpu.memory_space<vmem>>) attributes {dimension_semantics = [#tpu.dimension_semantics<parallel>], iteration_bounds = array<i64: 2>, scalar_prefetch = 0 : i64, scratch_operands = 1 : i64, tpu.core_type = #tpu.core_type<tc>, window_params = [{transform_indices = @transform_0, window_bounds = array<i64: 2, 32, 64>}, {pipeline_mode = #tpu.pipeline_mode<synchronous>, transform_indices = @transform_1, window_bounds = array<i64: 8, 32>}, {pipeline_mode = #tpu.pipeline_mode<synchronous>, transform_indices = @transform_2, window_bounds = array<i64: 8, 1>}, {pipeline_mode = #tpu.pipeline_mode<synchronous>, transform_indices = @transform_3, window_bounds = array<i64: 64, 256>}, {transform_indices = @transform_4, window_bounds = array<i64: 2, 8, 256>}, {transform_indices = @transform_5, window_bounds = array<i64: 2, 8, 1>}, {transform_indices = @transform_6, window_bounds = array<i64: 2, 1, 256>}]} {
    %c0 = arith.constant 0 : index
    %c0_0 = arith.constant 0 : index
    %0 = vector.load %arg2[%c0, %c0_0] : memref<8x32xbf16, #tpu.memory_space<vmem>>, vector<8x32xbf16>
    %c0_1 = arith.constant 0 : index
    %c0_2 = arith.constant 0 : index
    %1 = vector.load %arg3[%c0_1, %c0_2] : memref<8x1xf32, #tpu.memory_space<vmem>>, vector<8x1xf32>
    %c0_3 = arith.constant 0 : index
    %c0_4 = arith.constant 0 : index
    %c0_5 = arith.constant 0 : index
    %2 = vector.load %arg1[%c0_3, %c0_4, %c0_5] : memref<2x32x64xbf16, #tpu.memory_space<vmem>>, vector<1x32x64xbf16>
    %3 = vector.shape_cast %2 : vector<1x32x64xbf16> to vector<32x64xbf16>
    %cst = arith.constant dense<0.000000e+00> : vector<8x64xf32>
    %4 = tpu.matmul %0, %3, %cst {dimension_numbers = #tpu.dot_dimension_numbers<[1], [0], [0], [1], [0, 0, 1, 1], [], []>} : vector<8x32xbf16>, vector<32x64xbf16>, vector<8x64xf32> -> vector<8x64xf32>
    %5 = vector.broadcast %1 : vector<8x1xf32> to vector<8x64xf32>
    %6 = arith.addf %4, %5 : vector<8x64xf32>
    %cst_6 = arith.constant dense<0xFF800000> : vector<64xf32>
    %7 = vector.multi_reduction <maximumf>, %6, %cst_6 [0] : vector<8x64xf32> to vector<64xf32>
    %8 = vector.shape_cast %7 : vector<64xf32> to vector<1x64xf32>
    %9 = vector.broadcast %8 : vector<1x64xf32> to vector<8x64xf32>
    %10 = arith.subf %6, %9 : vector<8x64xf32>
    %11 = math.exp %10 : vector<8x64xf32>
    %cst_7 = arith.constant dense<0.000000e+00> : vector<64xf32>
    %12 = vector.multi_reduction <add>, %11, %cst_7 [0] : vector<8x64xf32> to vector<64xf32>
    %13 = vector.shape_cast %12 : vector<64xf32> to vector<1x64xf32>
    %14 = tpu.reciprocal %13 {approx = true} : vector<1x64xf32> -> vector<1x64xf32>
    %15 = vector.broadcast %14 : vector<1x64xf32> to vector<8x64xf32>
    %16 = arith.mulf %11, %15 : vector<8x64xf32>
    %cst_8 = arith.constant dense<0.000000e+00> : vector<8xf32>
    %17 = vector.multi_reduction <add>, %4, %cst_8 [1] : vector<8x64xf32> to vector<8xf32>
    %18 = vector.shape_cast %17 : vector<8xf32> to vector<8x1xf32>
    %cst_9 = arith.constant 1.562500e-02 : f32
    %19 = vector.broadcast %cst_9 : f32 to vector<8x1xf32>
    %20 = arith.mulf %18, %19 : vector<8x1xf32>
    %21 = arith.addf %20, %1 : vector<8x1xf32>
    %cst_10 = arith.constant dense<0xFF800000> : vector<1xf32>
    %22 = vector.multi_reduction <maximumf>, %21, %cst_10 [0] : vector<8x1xf32> to vector<1xf32>
    %23 = vector.shape_cast %22 : vector<1xf32> to vector<1x1xf32>
    %24 = vector.broadcast %23 : vector<1x1xf32> to vector<8x1xf32>
    %25 = arith.subf %21, %24 : vector<8x1xf32>
    %26 = math.exp %25 : vector<8x1xf32>
    %cst_11 = arith.constant dense<0.000000e+00> : vector<1xf32>
    %27 = vector.multi_reduction <add>, %26, %cst_11 [0] : vector<8x1xf32> to vector<1xf32>
    %28 = vector.shape_cast %27 : vector<1xf32> to vector<1x1xf32>
    %29 = tpu.reciprocal %28 {approx = true} : vector<1x1xf32> -> vector<1x1xf32>
    %30 = vector.broadcast %29 : vector<1x1xf32> to vector<8x1xf32>
    %31 = arith.mulf %26, %30 : vector<8x1xf32>
    %c0_12 = arith.constant 0 : index
    %c0_13 = arith.constant 0 : index
    %c0_14 = arith.constant 0 : index
    %32 = vector.load %arg6[%c0_12, %c0_13, %c0_14] : memref<2x8x1xf32, #tpu.memory_space<vmem>>, vector<1x8x1xf32>
    %33 = vector.shape_cast %32 : vector<1x8x1xf32> to vector<8x1xf32>
    %34 = vector.shape_cast %31 : vector<8x1xf32> to vector<1x8x1xf32>
    tpu.vector_store %arg6[%c0_12, %c0_13, %c0_14], %34 {strides = array<i32>} : memref<2x8x1xf32, #tpu.memory_space<vmem>>, vector<1x8x1xf32>,
    %35 = vector.broadcast %31 : vector<8x1xf32> to vector<8x64xf32>
    %36 = arith.mulf %16, %35 : vector<8x64xf32>
    %cst_15 = arith.constant dense<0.000000e+00> : vector<64xf32>
    %37 = vector.multi_reduction <add>, %36, %cst_15 [0] : vector<8x64xf32> to vector<64xf32>
    %38 = vector.shape_cast %37 : vector<64xf32> to vector<1x64xf32>
    %c0_16 = arith.constant 0 : index
    %c0_17 = arith.constant 0 : index
    %39 = vector.load %arg8[%c0_16, %c0_17] : memref<18x64xf32, #tpu.memory_space<vmem>>, vector<8x64xf32>
    tpu.vector_store %arg8[%c0_16, %c0_17], %16 {strides = array<i32>} : memref<18x64xf32, #tpu.memory_space<vmem>>, vector<8x64xf32>,
    %c16 = arith.constant 16 : index
    %c0_18 = arith.constant 0 : index
    %40 = vector.load %arg8[%c16, %c0_18] : memref<18x64xf32, #tpu.memory_space<vmem>>, vector<1x64xf32>
    tpu.vector_store %arg8[%c16, %c0_18], %38 {strides = array<i32>} : memref<18x64xf32, #tpu.memory_space<vmem>>, vector<1x64xf32>,
    %c1 = arith.constant 1 : index
    %c0_19 = arith.constant 0 : index
    %c0_20 = arith.constant 0 : index
    %41 = vector.load %arg1[%c1, %c0_19, %c0_20] : memref<2x32x64xbf16, #tpu.memory_space<vmem>>, vector<1x32x64xbf16>
    %42 = vector.shape_cast %41 : vector<1x32x64xbf16> to vector<32x64xbf16>
    %cst_21 = arith.constant dense<0.000000e+00> : vector<8x64xf32>
    %43 = tpu.matmul %0, %42, %cst_21 {dimension_numbers = #tpu.dot_dimension_numbers<[1], [0], [0], [1], [0, 0, 1, 1], [], []>} : vector<8x32xbf16>, vector<32x64xbf16>, vector<8x64xf32> -> vector<8x64xf32>
    %44 = vector.broadcast %1 : vector<8x1xf32> to vector<8x64xf32>
    %45 = arith.addf %43, %44 : vector<8x64xf32>
    %cst_22 = arith.constant dense<0xFF800000> : vector<64xf32>
    %46 = vector.multi_reduction <maximumf>, %45, %cst_22 [0] : vector<8x64xf32> to vector<64xf32>
    %47 = vector.shape_cast %46 : vector<64xf32> to vector<1x64xf32>
    %48 = vector.broadcast %47 : vector<1x64xf32> to vector<8x64xf32>
    %49 = arith.subf %45, %48 : vector<8x64xf32>
    %50 = math.exp %49 : vector<8x64xf32>
    %cst_23 = arith.constant dense<0.000000e+00> : vector<64xf32>
    %51 = vector.multi_reduction <add>, %50, %cst_23 [0] : vector<8x64xf32> to vector<64xf32>
    %52 = vector.shape_cast %51 : vector<64xf32> to vector<1x64xf32>
    %53 = tpu.reciprocal %52 {approx = true} : vector<1x64xf32> -> vector<1x64xf32>
    %54 = vector.broadcast %53 : vector<1x64xf32> to vector<8x64xf32>
    %55 = arith.mulf %50, %54 : vector<8x64xf32>
    %cst_24 = arith.constant dense<0.000000e+00> : vector<8xf32>
    %56 = vector.multi_reduction <add>, %43, %cst_24 [1] : vector<8x64xf32> to vector<8xf32>
    %57 = vector.shape_cast %56 : vector<8xf32> to vector<8x1xf32>
    %cst_25 = arith.constant 1.562500e-02 : f32
    %58 = vector.broadcast %cst_25 : f32 to vector<8x1xf32>
    %59 = arith.mulf %57, %58 : vector<8x1xf32>
    %60 = arith.addf %59, %1 : vector<8x1xf32>
    %cst_26 = arith.constant dense<0xFF800000> : vector<1xf32>
    %61 = vector.multi_reduction <maximumf>, %60, %cst_26 [0] : vector<8x1xf32> to vector<1xf32>
    %62 = vector.shape_cast %61 : vector<1xf32> to vector<1x1xf32>
    %63 = vector.broadcast %62 : vector<1x1xf32> to vector<8x1xf32>
    %64 = arith.subf %60, %63 : vector<8x1xf32>
    %65 = math.exp %64 : vector<8x1xf32>
    %cst_27 = arith.constant dense<0.000000e+00> : vector<1xf32>
    %66 = vector.multi_reduction <add>, %65, %cst_27 [0] : vector<8x1xf32> to vector<1xf32>
    %67 = vector.shape_cast %66 : vector<1xf32> to vector<1x1xf32>
    %68 = tpu.reciprocal %67 {approx = true} : vector<1x1xf32> -> vector<1x1xf32>
    %69 = vector.broadcast %68 : vector<1x1xf32> to vector<8x1xf32>
    %70 = arith.mulf %65, %69 : vector<8x1xf32>
    %c1_28 = arith.constant 1 : index
    %c0_29 = arith.constant 0 : index
    %c0_30 = arith.constant 0 : index
    %71 = vector.load %arg6[%c1_28, %c0_29, %c0_30] : memref<2x8x1xf32, #tpu.memory_space<vmem>>, vector<1x8x1xf32>
    %72 = vector.shape_cast %71 : vector<1x8x1xf32> to vector<8x1xf32>
    %73 = vector.shape_cast %70 : vector<8x1xf32> to vector<1x8x1xf32>
    tpu.vector_store %arg6[%c1_28, %c0_29, %c0_30], %73 {strides = array<i32>} : memref<2x8x1xf32, #tpu.memory_space<vmem>>, vector<1x8x1xf32>,
    %74 = vector.broadcast %70 : vector<8x1xf32> to vector<8x64xf32>
    %75 = arith.mulf %55, %74 : vector<8x64xf32>
    %cst_31 = arith.constant dense<0.000000e+00> : vector<64xf32>
    %76 = vector.multi_reduction <add>, %75, %cst_31 [0] : vector<8x64xf32> to vector<64xf32>
    %77 = vector.shape_cast %76 : vector<64xf32> to vector<1x64xf32>
    %c8 = arith.constant 8 : index
    %c0_32 = arith.constant 0 : index
    %78 = vector.load %arg8[%c8, %c0_32] : memref<18x64xf32, #tpu.memory_space<vmem>>, vector<8x64xf32>
    tpu.vector_store %arg8[%c8, %c0_32], %55 {strides = array<i32>} : memref<18x64xf32, #tpu.memory_space<vmem>>, vector<8x64xf32>,
    %c17 = arith.constant 17 : index
    %c0_33 = arith.constant 0 : index
    %79 = vector.load %arg8[%c17, %c0_33] : memref<18x64xf32, #tpu.memory_space<vmem>>, vector<1x64xf32>
    tpu.vector_store %arg8[%c17, %c0_33], %77 {strides = array<i32>} : memref<18x64xf32, #tpu.memory_space<vmem>>, vector<1x64xf32>,
    %c0_34 = arith.constant 0 : index
    %c0_35 = arith.constant 0 : index
    %80 = vector.load %arg8[%c0_34, %c0_35] : memref<18x64xf32, #tpu.memory_space<vmem>>, vector<18x64xf32>
    %81 = arith.truncf %80 : vector<18x64xf32> to vector<18x64xbf16>
    %c0_36 = arith.constant 0 : index
    %c0_37 = arith.constant 0 : index
    %82 = vector.load %arg4[%c0_36, %c0_37] : memref<64x256xbf16, #tpu.memory_space<vmem>>, vector<64x256xbf16>
    %cst_38 = arith.constant dense<0.000000e+00> : vector<18x256xf32>
    %83 = tpu.matmul %81, %82, %cst_38 {dimension_numbers = #tpu.dot_dimension_numbers<[1], [0], [0], [1], [0, 0, 1, 1], [], []>} : vector<18x64xbf16>, vector<64x256xbf16>, vector<18x256xf32> -> vector<18x256xf32>
    %84 = vector.extract_strided_slice %83 {offsets = [0, 0], sizes = [8, 256], strides = [1, 1]} : vector<18x256xf32> to vector<8x256xf32>
    %c0_39 = arith.constant 0 : index
    %c0_40 = arith.constant 0 : index
    %c0_41 = arith.constant 0 : index
    %85 = vector.load %arg5[%c0_39, %c0_40, %c0_41] : memref<2x8x256xf32, #tpu.memory_space<vmem>>, vector<1x8x256xf32>
    %86 = vector.shape_cast %85 : vector<1x8x256xf32> to vector<8x256xf32>
    %87 = vector.shape_cast %84 : vector<8x256xf32> to vector<1x8x256xf32>
    tpu.vector_store %arg5[%c0_39, %c0_40, %c0_41], %87 {strides = array<i32>} : memref<2x8x256xf32, #tpu.memory_space<vmem>>, vector<1x8x256xf32>,
    %88 = vector.extract_strided_slice %83 {offsets = [16, 0], sizes = [1, 256], strides = [1, 1]} : vector<18x256xf32> to vector<1x256xf32>
    %c0_42 = arith.constant 0 : index
    %c0_43 = arith.constant 0 : index
    %c0_44 = arith.constant 0 : index
    %89 = vector.load %arg7[%c0_42, %c0_43, %c0_44] : memref<2x1x256xf32, #tpu.memory_space<vmem>>, vector<1x1x256xf32>
    %90 = vector.shape_cast %89 : vector<1x1x256xf32> to vector<1x256xf32>
    %91 = vector.shape_cast %88 : vector<1x256xf32> to vector<1x1x256xf32>
    tpu.vector_store %arg7[%c0_42, %c0_43, %c0_44], %91 {strides = array<i32>} : memref<2x1x256xf32, #tpu.memory_space<vmem>>, vector<1x1x256xf32>,
    %92 = vector.extract_strided_slice %83 {offsets = [8, 0], sizes = [8, 256], strides = [1, 1]} : vector<18x256xf32> to vector<8x256xf32>
    %c1_45 = arith.constant 1 : index
    %c0_46 = arith.constant 0 : index
    %c0_47 = arith.constant 0 : index
    %93 = vector.load %arg5[%c1_45, %c0_46, %c0_47] : memref<2x8x256xf32, #tpu.memory_space<vmem>>, vector<1x8x256xf32>
    %94 = vector.shape_cast %93 : vector<1x8x256xf32> to vector<8x256xf32>
    %95 = vector.shape_cast %92 : vector<8x256xf32> to vector<1x8x256xf32>
    tpu.vector_store %arg5[%c1_45, %c0_46, %c0_47], %95 {strides = array<i32>} : memref<2x8x256xf32, #tpu.memory_space<vmem>>, vector<1x8x256xf32>,
    %96 = vector.extract_strided_slice %83 {offsets = [17, 0], sizes = [1, 256], strides = [1, 1]} : vector<18x256xf32> to vector<1x256xf32>
    %c1_48 = arith.constant 1 : index
    %c0_49 = arith.constant 0 : index
    %c0_50 = arith.constant 0 : index
    %97 = vector.load %arg7[%c1_48, %c0_49, %c0_50] : memref<2x1x256xf32, #tpu.memory_space<vmem>>, vector<1x1x256xf32>
    %98 = vector.shape_cast %97 : vector<1x1x256xf32> to vector<1x256xf32>
    %99 = vector.shape_cast %96 : vector<1x256xf32> to vector<1x1x256xf32>
    tpu.vector_store %arg7[%c1_48, %c0_49, %c0_50], %99 {strides = array<i32>} : memref<2x1x256xf32, #tpu.memory_space<vmem>>, vector<1x1x256xf32>,
    return
  }
  func.func @transform_0(%arg0: i32) -> (i32, i32, i32) {
    %c0_i32 = arith.constant 0 : i32
    %c0_i32_0 = arith.constant 0 : i32
    %c0_i32_1 = arith.constant 0 : i32
    return %arg0, %c0_i32, %c0_i32_0 : i32, i32, i32
  }
  func.func @transform_1(%arg0: i32) -> (i32, i32) {
    %c0_i32 = arith.constant 0 : i32
    %c0_i32_0 = arith.constant 0 : i32
    %c0_i32_1 = arith.constant 0 : i32
    return %c0_i32, %c0_i32_0 : i32, i32
  }
  func.func @transform_2(%arg0: i32) -> (i32, i32) {
    %c0_i32 = arith.constant 0 : i32
    %c0_i32_0 = arith.constant 0 : i32
    %c0_i32_1 = arith.constant 0 : i32
    return %c0_i32, %c0_i32_0 : i32, i32
  }
  func.func @transform_3(%arg0: i32) -> (i32, i32) {
    %c0_i32 = arith.constant 0 : i32
    %c0_i32_0 = arith.constant 0 : i32
    %c0_i32_1 = arith.constant 0 : i32
    return %c0_i32, %c0_i32_0 : i32, i32
  }
  func.func @transform_4(%arg0: i32) -> (i32, i32, i32) {
    %c0_i32 = arith.constant 0 : i32
    %c0_i32_0 = arith.constant 0 : i32
    %c0_i32_1 = arith.constant 0 : i32
    return %arg0, %c0_i32, %c0_i32_0 : i32, i32, i32
  }
  func.func @transform_5(%arg0: i32) -> (i32, i32, i32) {
    %c0_i32 = arith.constant 0 : i32
    %c0_i32_0 = arith.constant 0 : i32
    %c0_i32_1 = arith.constant 0 : i32
    return %arg0, %c0_i32, %c0_i32_0 : i32, i32, i32
  }
  func.func @transform_6(%arg0: i32) -> (i32, i32, i32) {
    %c0_i32 = arith.constant 0 : i32
    %c0_i32_0 = arith.constant 0 : i32
    %c0_i32_1 = arith.constant 0 : i32
    return %arg0, %c0_i32, %c0_i32_0 : i32, i32, i32
  }
}

</mosaic_0001>

<llo_original>
// kernel: tpu_custom_call.1
$region0: #{tpu_custom_call.1}
  #allocation0 [shape = 'u32[]', space=smem, size = 0x4, offset = 0x4, fixed_abs, tag = 'smem constant byte address 0x4 - core index']
  #allocation1 [shape = 'u32[144,128]{1,0:T(1,128)}', space=vmem, size = 0x12000, scoped, tag = 'internal scratch']
  #allocation2 [shape = 'f32[18,64]{1,0:T(8,128)}', space=vmem, size = 0x3000, scoped, tag = 'scratch operand']
  %s0 = inlined_call_operand.hbm [shape: bf16[4,32,64], index: 0, kind: input, shape index: {}]
  %s1 = inlined_call_operand.vmem [shape: bf16[8,32], index: 1, kind: input, shape index: {}]
  %s2 = inlined_call_operand.vmem [shape: f32[8,1], index: 2, kind: input, shape index: {}]
  %s3 = inlined_call_operand.hbm [shape: bf16[64,256], index: 3, kind: input, shape index: {}]
  %s4 = inlined_call_operand.hbm [shape: f32[4,8,256], index: 4, kind: output, shape index: {0}]
  %s5 = inlined_call_operand.vmem [shape: f32[4,8,1], index: 5, kind: output, shape index: {1}]
  %s6 = inlined_call_operand.hbm [shape: f32[4,1,256], index: 6, kind: output, shape index: {2}]
  %7 = xla_tuple %s4, %s5, %s6
  %s8 = sld [smem:[#allocation0]]
  $region73: #{tpu_custom_call.1} parent=0
    _
  %s10 = ssub.s32 1, %s8
  %s11 = scalar_select 0, %s10, %s8
  $region1: #{tpu_custom_call.1} parent=0
    #allocation3 [shape = 'u8[32768]{0}', space=vmem, size = 0x8000, scoped, tag = 'input window, operand 0']
    #allocation4 [shape = 's32[2]{0}', space=sflag, size = 0x8, scoped, tag = 'scoped memory for tpu_custom_call.1']
    #allocation5 [shape = 's32[2]{0}', space=sflag, size = 0x8, scoped, tag = 'scoped memory for tpu_custom_call.1']
    #allocation6 [shape = 'u8[32768]{0}', space=vmem, size = 0x8000, scoped, tag = 'input window, operand 3, single buffered']
    #allocation7 [shape = 's32[1]{0}', space=sflag, size = 0x4, scoped, tag = 'scoped memory for tpu_custom_call.1']
    #allocation8 [shape = 'u8[32768]{0}', space=vmem, size = 0x8000, scoped, tag = 'output window, operand 0']
    #allocation9 [shape = 'u8[4096]{0}', space=vmem, size = 0x1000, scoped, tag = 'output window, operand 2']
    #allocation10 [shape = 's32[2]{0}', space=sflag, size = 0x8, scoped, tag = 'scoped memory for tpu_custom_call.1']
    %12 = vsyncpa [#allocation4], 0
    %s13 = scalar_lea.sflag [#allocation4], 1
    %14 = vsyncpa %s13, 0
    %15 = vsyncpa [#allocation7], 0
    %16 = vsyncpa [#allocation5], 0
    %s17 = scalar_lea.sflag [#allocation5], 1
    %18 = vsyncpa %s17, 0
    %19 = vsyncpa [#allocation10], 0
    %s20 = scalar_lea.sflag [#allocation10], 1
    %21 = vsyncpa %s20, 0
    loop: start=0, step=1, limit=4
    $region2: #{tpu_custom_call.1} parent=1 // loop_pre_header
      _
    $region3: #{tpu_custom_call.1} parent=1 // loop_header
      %s23 = sphi 0, %s27
      %p24 = scmp.ge.s32.totalorder %s23, 4
      %s33 = sphi 0, %s35
      %s36 = sphi 0, %s33
      %s37 = sphi 0, %s36
      %s53 = sphi 0, %s37
      %s57 = sphi 0, %s57
      %s59 = sphi 0, %s57
      %s60 = sphi 0, %s59
      %s74 = sphi 0, %s60
      %s78 = sphi 0, %s78
      %s80 = sphi 0, %s78
      %s81 = sphi 0, %s80
      %s95 = sphi 0, %s81
      %s99 = sphi 0, %s99
      %s101 = sphi 0, %s99
      %s102 = sphi 0, %s101
      %s116 = sphi 0, %s102
      %s122 = sphi 0, %s124
      %s125 = sphi 0, %s122
      %s126 = sphi 0, %s125
      %s142 = sphi 0, %s126
      %s148 = sphi 0, %s150
      %s151 = sphi 0, %s148
      %s152 = sphi 0, %s151
      %s168 = sphi 0, %s152
      %s174 = sphi 0, %s176
      %s177 = sphi 0, %s174
      %s178 = sphi 0, %s177
      %s194 = sphi 0, %s178
    $region4: #{tpu_custom_call.1} parent=1 // loop_header_branch
      %26 = sbr.rel (%p24) target = $region8
    $region5: #{tpu_custom_call.1} parent=1 // loop_body
      %s28 = ssub.s32 %s23, 1
      %s29 = ssub.s32 %s23, 2
      %s30 = sadd.s32 %s23, 1
      %s31 = ssub.s32 %s23, %s30
      %p32 = scmp.eq.s32.totalorder %s31, 0
      %s34 = sadd.s32 %s33, 1
      %s35 = scalar_select %p32, %s33, %s34
      %p38 = pneg %p32
      %p39 = scmp.eq.s32.totalorder %s23, 1
      %p40 = por %p38, %p39
      %p41 = scmp.ne.s32.totalorder %s33, %s36
      %p42 = scmp.eq.s32.totalorder %s23, 0
      %p43 = por %p41, %p42
      %p44 = scmp.ne.s32.totalorder %s33, %s36
      %p45 = scmp.eq.s32.totalorder %s28, 1
      %p46 = por %p44, %p45
      %p47 = scmp.ne.s32.totalorder %s36, %s37
      %p48 = scmp.eq.s32.totalorder %s28, 0
      %p49 = por %p47, %p48
      %p50 = scmp.ne.s32.totalorder %s36, %s37
      %p51 = scmp.eq.s32.totalorder %s29, 1
      %p52 = por %p50, %p51
      %p54 = scmp.ne.s32.totalorder %s37, %s53
      %p55 = scmp.eq.s32.totalorder %s29, 0
      %p56 = por %p54, %p55
      %s58 = sadd.s32 %s57, 1
      %p61 = scmp.eq.s32.totalorder %s23, 1
      %p62 = scmp.ne.s32.totalorder %s57, %s59
      %p63 = scmp.eq.s32.totalorder %s23, 0
      %p64 = por %p62, %p63
      %p65 = scmp.ne.s32.totalorder %s57, %s59
      %p66 = scmp.eq.s32.totalorder %s28, 1
      %p67 = por %p65, %p66
      %p68 = scmp.ne.s32.totalorder %s59, %s60
      %p69 = scmp.eq.s32.totalorder %s28, 0
      %p70 = por %p68, %p69
      %p71 = scmp.ne.s32.totalorder %s59, %s60
      %p72 = scmp.eq.s32.totalorder %s29, 1
      %p73 = por %p71, %p72
      %p75 = scmp.ne.s32.totalorder %s60, %s74
      %p76 = scmp.eq.s32.totalorder %s29, 0
      %p77 = por %p75, %p76
      %s79 = sadd.s32 %s78, 1
      %p82 = scmp.eq.s32.totalorder %s23, 1
      %p83 = scmp.ne.s32.totalorder %s78, %s80
      %p84 = scmp.eq.s32.totalorder %s23, 0
      %p85 = por %p83, %p84
      %p86 = scmp.ne.s32.totalorder %s78, %s80
      %p87 = scmp.eq.s32.totalorder %s28, 1
      %p88 = por %p86, %p87
      %p89 = scmp.ne.s32.totalorder %s80, %s81
      %p90 = scmp.eq.s32.totalorder %s28, 0
      %p91 = por %p89, %p90
      %p92 = scmp.ne.s32.totalorder %s80, %s81
      %p93 = scmp.eq.s32.totalorder %s29, 1
      %p94 = por %p92, %p93
      %p96 = scmp.ne.s32.totalorder %s81, %s95
      %p97 = scmp.eq.s32.totalorder %s29, 0
      %p98 = por %p96, %p97
      %s100 = sadd.s32 %s99, 1
      %p103 = scmp.eq.s32.totalorder %s23, 1
      %p104 = scmp.ne.s32.totalorder %s99, %s101
      %p105 = scmp.eq.s32.totalorder %s23, 0
      %p106 = por %p104, %p105
      %p107 = scmp.ne.s32.totalorder %s99, %s101
      %p108 = scmp.eq.s32.totalorder %s28, 1
      %p109 = por %p107, %p108
      %p110 = scmp.ne.s32.totalorder %s101, %s102
      %p111 = scmp.eq.s32.totalorder %s28, 0
      %p112 = por %p110, %p111
      %p113 = scmp.ne.s32.totalorder %s101, %s102
      %p114 = scmp.eq.s32.totalorder %s29, 1
      %p115 = por %p113, %p114
      %p117 = scmp.ne.s32.totalorder %s102, %s116
      %p118 = scmp.eq.s32.totalorder %s29, 0
      %p119 = por %p117, %p118
      %s120 = ssub.s32 %s23, %s30
      %p121 = scmp.eq.s32.totalorder %s120, 0
      %s123 = sadd.s32 %s122, 1
      %s124 = scalar_select %p121, %s122, %s123
      %p127 = pneg %p121
      %p128 = scmp.eq.s32.totalorder %s23, 1
      %p129 = por %p127, %p128
      %p130 = scmp.ne.s32.totalorder %s122, %s125
      %p131 = scmp.eq.s32.totalorder %s23, 0
      %p132 = por %p130, %p131
      %p133 = scmp.ne.s32.totalorder %s122, %s125
      %p134 = scmp.eq.s32.totalorder %s28, 1
      %p135 = por %p133, %p134
      %p136 = scmp.ne.s32.totalorder %s125, %s126
      %p137 = scmp.eq.s32.totalorder %s28, 0
      %p138 = por %p136, %p137
      %p139 = scmp.ne.s32.totalorder %s125, %s126
      %p140 = scmp.eq.s32.totalorder %s29, 1
      %p141 = por %p139, %p140
      %p143 = scmp.ne.s32.totalorder %s126, %s142
      %p144 = scmp.eq.s32.totalorder %s29, 0
      %p145 = por %p143, %p144
      %s146 = ssub.s32 %s23, %s30
      %p147 = scmp.eq.s32.totalorder %s146, 0
      %s149 = sadd.s32 %s148, 1
      %s150 = scalar_select %p147, %s148, %s149
      %p153 = pneg %p147
      %p154 = scmp.eq.s32.totalorder %s23, 1
      %p155 = por %p153, %p154
      %p156 = scmp.ne.s32.totalorder %s148, %s151
      %p157 = scmp.eq.s32.totalorder %s23, 0
      %p158 = por %p156, %p157
      %p159 = scmp.ne.s32.totalorder %s148, %s151
      %p160 = scmp.eq.s32.totalorder %s28, 1
      %p161 = por %p159, %p160
      %p162 = scmp.ne.s32.totalorder %s151, %s152
      %p163 = scmp.eq.s32.totalorder %s28, 0
      %p164 = por %p162, %p163
      %p165 = scmp.ne.s32.totalorder %s151, %s152
      %p166 = scmp.eq.s32.totalorder %s29, 1
      %p167 = por %p165, %p166
      %p169 = scmp.ne.s32.totalorder %s152, %s168
      %p170 = scmp.eq.s32.totalorder %s29, 0
      %p171 = por %p169, %p170
      %s172 = ssub.s32 %s23, %s30
      %p173 = scmp.eq.s32.totalorder %s172, 0
      %s175 = sadd.s32 %s174, 1
      %s176 = scalar_select %p173, %s174, %s175
      %p179 = pneg %p173
      %p180 = scmp.eq.s32.totalorder %s23, 1
      %p181 = por %p179, %p180
      %p182 = scmp.ne.s32.totalorder %s174, %s177
      %p183 = scmp.eq.s32.totalorder %s23, 0
      %p184 = por %p182, %p183
      %p185 = scmp.ne.s32.totalorder %s174, %s177
      %p186 = scmp.eq.s32.totalorder %s28, 1
      %p187 = por %p185, %p186
      %p188 = scmp.ne.s32.totalorder %s177, %s178
      %p189 = scmp.eq.s32.totalorder %s28, 0
      %p190 = por %p188, %p189
      %p191 = scmp.ne.s32.totalorder %s177, %s178
      %p192 = scmp.eq.s32.totalorder %s29, 1
      %p193 = por %p191, %p192
      %p195 = scmp.ne.s32.totalorder %s178, %s194
      %p196 = scmp.eq.s32.totalorder %s29, 0
      %p197 = por %p195, %p196
      %p198 = scmp.le.s32.totalorder 1, %s23
      %p199 = scmp.lt.s32.totalorder %s23, 3
      %p200 = pnand %p198, %p199
      %p201 = pneg %p200
      // Predicated region
      $region9: #{tpu_custom_call.1} parent=5 // pred_check
        _
      $region10: #{tpu_custom_call.1} parent=5 // pred_check_branch
        %203 = sbr.rel (%p200) target = $region12
      $region11: #{tpu_custom_call.1} parent=5 // pred_region
        %s204 = ssub.s32 %s23, 1
        // Predicated region
        $region13: #{tpu_custom_call.1} parent=11 // pred_check
          %p205 = pneg %p70
        $region14: #{tpu_custom_call.1} parent=11 // pred_check_branch
          %207 = sbr.rel (%p205) target = $region16
        $region15: #{tpu_custom_call.1} parent=11 // pred_region
          _
        $region16: #{tpu_custom_call.1} parent=11 // pred_fallthru
          _
        // Predicated region
        $region17: #{tpu_custom_call.1} parent=11 // pred_check
          %p208 = pneg %p91
        $region18: #{tpu_custom_call.1} parent=11 // pred_check_branch
          %210 = sbr.rel (%p208) target = $region20
        $region19: #{tpu_custom_call.1} parent=11 // pred_region
          _
        $region20: #{tpu_custom_call.1} parent=11 // pred_fallthru
          _
        // Predicated region
        $region21: #{tpu_custom_call.1} parent=11 // pred_check
          %p211 = pneg %p112
        $region22: #{tpu_custom_call.1} parent=11 // pred_check_branch
          %213 = sbr.rel (%p211) target = $region24
        $region23: #{tpu_custom_call.1} parent=11 // pred_region
          %s215 = ssub.s32 1024, 1024
          %216 = vsyncadd [#allocation7], %s215
          %s217 = sshll.u32 [#allocation6], 4
          %s218 = int_to_ptr.vmem [resolvable:$true] %s217
          %223 = dma.hbm_to_vmem [thread:$0]  %s3, 1024, %s218, [#allocation7], 128, 128, 8
        $region24: #{tpu_custom_call.1} parent=11 // pred_fallthru
          _
      $region12: #{tpu_custom_call.1} parent=5 // pred_fallthru
        _
      %p224 = scmp.lt.s32.totalorder %s23, 2
      // Predicated region
      $region25: #{tpu_custom_call.1} parent=5 // pred_check
        %p225 = pneg %p224
      $region26: #{tpu_custom_call.1} parent=5 // pred_check_branch
        %227 = sbr.rel (%p225) target = $region28
      $region27: #{tpu_custom_call.1} parent=5 // pred_region
        // Predicated region
        $region29: #{tpu_custom_call.1} parent=27 // pred_check
          %p228 = pneg %p43
        $region30: #{tpu_custom_call.1} parent=27 // pred_check_branch
          %230 = sbr.rel (%p228) target = $region32
        $region31: #{tpu_custom_call.1} parent=27 // pred_region
          %s231 = sand.u32 %s33, 1
          %s232 = scalar_lea.sflag [#allocation4], %s231
          %s233 = sand.u32 %s33, 1
          %s234 = smul.addr %s233, 32
          %s235 = scalar_lea.vmem [#allocation3], %s234
          %s236 = smul.u32 2, %s23
          %s238 = ssub.s32 512, 512
          %239 = vsyncadd %s232, %s238
          %s240 = smul.addr %s236, 4
          %s241 = smul.addr %s240, 64
          %s242 = scalar_lea.hbm %s0, %s241
          %s243 = sshll.u32 %s235, 4
          %s244 = int_to_ptr.vmem [resolvable:$true] %s243
          %249 = dma.hbm_to_vmem [thread:$0]  %s242, 512, %s244, %s232, 64, 64, 4
        $region32: #{tpu_custom_call.1} parent=27 // pred_fallthru
          _
      $region28: #{tpu_custom_call.1} parent=5 // pred_fallthru
        _
      %p250 = scmp.le.s32.totalorder 1, %s23
      %p251 = scmp.lt.s32.totalorder %s23, 3
      %p252 = pnand %p250, %p251
      %p253 = pneg %p252
      // Predicated region
      $region33: #{tpu_custom_call.1} parent=5 // pred_check
        _
      $region34: #{tpu_custom_call.1} parent=5 // pred_check_branch
        %255 = sbr.rel (%p252) target = $region36
      $region35: #{tpu_custom_call.1} parent=5 // pred_region
        %s256 = ssub.s32 %s23, 1
        %s257 = sand.u32 %s36, 1
        %s258 = scalar_lea.sflag [#allocation4], %s257
        %s259 = sand.u32 %s36, 1
        %s260 = smul.addr %s259, 32
        %s261 = scalar_lea.vmem [#allocation3], %s260
        // Predicated region
        $region37: #{tpu_custom_call.1} parent=35 // pred_check
          %p262 = pneg %p49
        $region38: #{tpu_custom_call.1} parent=35 // pred_check_branch
          %264 = sbr.rel (%p262) target = $region40
        $region39: #{tpu_custom_call.1} parent=35 // pred_region
          %265 = dma.done %s258, 512
        $region40: #{tpu_custom_call.1} parent=35 // pred_fallthru
          _
        // Predicated region
        $region41: #{tpu_custom_call.1} parent=35 // pred_check
          %p266 = pneg %p112
        $region42: #{tpu_custom_call.1} parent=35 // pred_check_branch
          %268 = sbr.rel (%p266) target = $region44
        $region43: #{tpu_custom_call.1} parent=35 // pred_region
          %269 = dma.done [#allocation7], 1024
        $region44: #{tpu_custom_call.1} parent=35 // pred_fallthru
          _
        %s270 = sand.u32 %s36, 1
        %s271 = scalar_lea.sflag [#allocation4], %s270
        %s272 = sand.u32 %s36, 1
        %s273 = smul.addr %s272, 32
        %s274 = scalar_lea.vmem [#allocation3], %s273
        %p275 = pneg %p49
        %p276 = pneg %p46
        %p277 = pneg %p70
        %p278 = pneg %p67
        %p279 = pneg %p91
        %p280 = pneg %p88
        %p281 = pneg %p112
        %p282 = pneg %p109
        %p283 = pneg %p138
        %p284 = pneg %p135
        %s285 = sand.u32 %s125, 1
        %s286 = scalar_lea.sflag [#allocation5], %s285
        %s287 = sand.u32 %s125, 1
        %s288 = smul.addr %s287, 32
        %s289 = scalar_lea.vmem [#allocation8], %s288
        %p290 = pneg %p164
        %p291 = pneg %p161
        %s292 = smul.u32 2, %s28
        %p293 = scmp.lt.s32.totalorder %s292, 3
        %s294 = scalar_select %p293, %s292, 3
        %s295 = smul.addr %s294, 8
        %s296 = scalar_lea.vmem %s5, %s295
        %p297 = pneg %p190
        %p298 = pneg %p187
        %s299 = sand.u32 %s177, 1
        %s300 = scalar_lea.sflag [#allocation10], %s299
        %s301 = sand.u32 %s177, 1
        %s302 = smul.addr %s301, 4
        %s303 = scalar_lea.vmem [#allocation9], %s302
        %s304 = smul.u32 2, %s28
        %s305 = smul.u32 2, %s28
        %s306 = smul.u32 2, %s28
        %p307 = scmp.lt.s32.totalorder %s306, 3
        %s308 = scalar_select %p307, %s306, 3
        %s309 = smul.addr %s308, 8
        %s310 = scalar_lea.vmem %s5, %s309
        %s311 = smul.u32 2, %s28
        %s312 = smul.u32 2, %s28
        %v314 = vld [vmem:[%s1] sm:$0xf]
        %v315 = vld [vmem:[%s2] sm:$0xff]
        %v316 = vld [vmem:[%s261] sm:$0xf]
        %v317 = vld [vmem:[%s261 + $0x4] sm:$0xf]
        %v318 = vld [vmem:[%s261 + $0x8] sm:$0xf]
        %v319 = vld [vmem:[%s261 + $0xc] sm:$0xf]
        %v324 = vunpack.c.l.b16 %v316
        %v325 = vunpack.c.l.b16 %v317
        %v326 = vunpack.c.l.b16 %v318
        %v327 = vunpack.c.l.b16 %v319
        %v328 = vpack.c.b16 %v325, %v324
        %v329 = vpack.c.b16 %v327, %v326
        %vm332 = vcmask 261120
        %v334 = vsel %vm332, %v314, 0
        %336 = vmatprep.subr.bf16.mxu0 0
        %337 = vmatpush1.bf16.msra.mxu0 %v328
        %338 = vmatprep.subr.bf16.mxu0 0
        %339 = vmatpush1.bf16.msra.mxu0 %v329
        %340 = vmatprep.subr.bf16.mxu0 0
        %341 = vmatpush1.bf16.msra.mxu0 0
        %342 = vmatprep.subr.bf16.mxu0 0
        %343 = vmatpush1.bf16.msra.mxu0 0
        %344 = vmatprep.subr.bf16.mxu0 0
        %345 = vmatpush1.bf16.msra.mxu0 0
        %346 = vmatprep.subr.bf16.mxu0 0
        %347 = vmatpush1.bf16.msra.mxu0 0
        %348 = vmatprep.subr.bf16.mxu0 0
        %349 = vmatpush1.bf16.msra.mxu0 0
        %350 = vmatprep.subr.bf16.mxu0 0
        %351 = vmatpush1.bf16.msra.mxu0 0
        %352 = vmatprep.subr.bf16.mxu0 0
        %353 = vmatpush1.bf16.msra.mxu0 0
        %354 = vmatprep.subr.bf16.mxu0 0
        %355 = vmatpush1.bf16.msra.mxu0 0
        %356 = vmatprep.subr.bf16.mxu0 0
        %357 = vmatpush1.bf16.msra.mxu0 0
        %358 = vmatprep.subr.bf16.mxu0 0
        %359 = vmatpush1.bf16.msra.mxu0 0
        %360 = vmatprep.subr.bf16.mxu0 0
        %361 = vmatpush1.bf16.msra.mxu0 0
        %362 = vmatprep.subr.bf16.mxu0 0
        %363 = vmatpush1.bf16.msra.mxu0 0
        %364 = vmatprep.subr.bf16.mxu0 0
        %365 = vmatpush1.bf16.msra.mxu0 0
        %366 = vmatprep.subr.bf16.mxu0 0
        %367 = vmatpush1.bf16.msra.mxu0 0
        %368 = vmatprep.mubr.bf16.mxu0 0
        %369 = vmatmul.mubr.bf16.gmra.mrb[0].mxu0 %v334
        %v370 = vpop.f32.mrb[0].mxu0
        %v371 = vadd.f32 0.0, %v370
        %v372 = vpop.f32.mrb[0].mxu0
        %v373 = vpop.f32.mrb[0].mxu0
        %v374 = vpop.f32.mrb[0].mxu0
        %375 = vdwg.mxu0
        %377 = vset.pattern.permute.xlu0 0
        %378 = vperm.xlu0 %377, %v315
        %v379 = vpop.permute.xlu0 %378
        %v381 = vadd.f32 %v371, %v379
        %vm382 = vcmask 523264
        %v383 = vsel %vm382, %v381, -inf
        %v384 = vrot.slane %v383, 4
        %v385 = vmax.f32 %v383, %v384
        %v386 = vrot.slane %v385, 2
        %v387 = vmax.f32 %v385, %v386
        %v388 = vrot.slane %v387, 1
        %v389 = vmax.f32 %v387, %v388
        %v390 = vsub.f32 %v381, %v389
        %v391 = vmul.f32 %v390, 1.442695
        %v392 = vpow.pop %v391
        %v393 = vsel %vm382, %v392, 0.0
        %v394 = vrot.slane %v393, 4
        %v395 = vadd.f32 %v393, %v394
        %v396 = vrot.slane %v395, 2
        %v397 = vadd.f32 %v395, %v396
        %v398 = vrot.slane %v397, 1
        %v399 = vadd.f32 %v397, %v398
        %v400 = vrcp.pop %v399
        %v401 = vmul.f32 %v392, %v400
        %v402 = vsel %vm382, %v371, 0.0
        %403 = vadd.xlane.f32.xlu0 %v402
        %v404 = vpop.xlane.xlu0 %403
        %v405 = vmul.f32 %v404, 0.015625
        %v406 = vadd.f32 %v405, %v315
        %vm407 = vcmask 7168
        %v408 = vsel %vm407, %v406, -inf
        %v409 = vrot.slane %v408, 4
        %v410 = vmax.f32 %v408, %v409
        %v411 = vrot.slane %v410, 2
        %v412 = vmax.f32 %v410, %v411
        %v413 = vrot.slane %v412, 1
        %v414 = vmax.f32 %v412, %v413
        %v415 = vsub.f32 %v406, %v414
        %v416 = vmul.f32 %v415, 1.442695
        %v417 = vpow.pop %v416
        %v418 = vsel %vm407, %v417, 0.0
        %v419 = vrot.slane %v418, 4
        %v420 = vadd.f32 %v418, %v419
        %v421 = vrot.slane %v420, 2
        %v422 = vadd.f32 %v420, %v421
        %v423 = vrot.slane %v422, 1
        %v424 = vadd.f32 %v422, %v423
        %v425 = vrcp.pop %v424
        %v426 = vmul.f32 %v417, %v425
        %427 = vst.msk [vmem:[%s310] sm:$0xff] %vm407, %v426
        %429 = vset.pattern.permute.xlu0 0
        %430 = vperm.xlu0 %429, %v426
        %v431 = vpop.permute.xlu0 %430
        %v433 = vmul.f32 %v401, %v431
        %v434 = vsel %vm382, %v433, 0.0
        %v435 = vrot.slane %v434, 4
        %v436 = vadd.f32 %v434, %v435
        %v437 = vrot.slane %v436, 2
        %v438 = vadd.f32 %v436, %v437
        %v439 = vrot.slane %v438, 1
        %v440 = vadd.f32 %v438, %v439
        %441 = vst.msk [vmem:[#allocation2] sm:$0xff] %vm382, %v401
        %vm442 = vcmask 516096
        %443 = vst.msk [vmem:[#allocation2 + $0x10] sm:$0x1] %vm442, %v440
        %s444 = scalar_lea.vmem %s261, 16 [#allocation3]
        %v445 = vld [vmem:[%s444] sm:$0xf]
        %v446 = vld [vmem:[%s444 + $0x4] sm:$0xf]
        %v447 = vld [vmem:[%s444 + $0x8] sm:$0xf]
        %v448 = vld [vmem:[%s444 + $0xc] sm:$0xf]
        %v453 = vunpack.c.l.b16 %v445
        %v454 = vunpack.c.l.b16 %v446
        %v455 = vunpack.c.l.b16 %v447
        %v456 = vunpack.c.l.b16 %v448
        %v457 = vpack.c.b16 %v454, %v453
        %v458 = vpack.c.b16 %v456, %v455
        %461 = vmatprep.subr.bf16.mxu0 0
        %462 = vmatpush1.bf16.msra.mxu0 %v457
        %463 = vmatprep.subr.bf16.mxu0 0
        %464 = vmatpush1.bf16.msra.mxu0 %v458
        %465 = vmatprep.subr.bf16.mxu0 0
        %466 = vmatpush1.bf16.msra.mxu0 0
        %467 = vmatprep.subr.bf16.mxu0 0
        %468 = vmatpush1.bf16.msra.mxu0 0
        %469 = vmatprep.subr.bf16.mxu0 0
        %470 = vmatpush1.bf16.msra.mxu0 0
        %471 = vmatprep.subr.bf16.mxu0 0
        %472 = vmatpush1.bf16.msra.mxu0 0
        %473 = vmatprep.subr.bf16.mxu0 0
        %474 = vmatpush1.bf16.msra.mxu0 0
        %475 = vmatprep.subr.bf16.mxu0 0
        %476 = vmatpush1.bf16.msra.mxu0 0
        %477 = vmatprep.subr.bf16.mxu0 0
        %478 = vmatpush1.bf16.msra.mxu0 0
        %479 = vmatprep.subr.bf16.mxu0 0
        %480 = vmatpush1.bf16.msra.mxu0 0
        %481 = vmatprep.subr.bf16.mxu0 0
        %482 = vmatpush1.bf16.msra.mxu0 0
        %483 = vmatprep.subr.bf16.mxu0 0
        %484 = vmatpush1.bf16.msra.mxu0 0
        %485 = vmatprep.subr.bf16.mxu0 0
        %486 = vmatpush1.bf16.msra.mxu0 0
        %487 = vmatprep.subr.bf16.mxu0 0
        %488 = vmatpush1.bf16.msra.mxu0 0
        %489 = vmatprep.subr.bf16.mxu0 0
        %490 = vmatpush1.bf16.msra.mxu0 0
        %491 = vmatprep.subr.bf16.mxu0 0
        %492 = vmatpush1.bf16.msra.mxu0 0
        %493 = vmatprep.mubr.bf16.mxu0 0
        %494 = vmatmul.mubr.bf16.gmra.mrb[0].mxu0 %v334
        %v495 = vpop.f32.mrb[0].mxu0
        %v496 = vadd.f32 0.0, %v495
        %v497 = vpop.f32.mrb[0].mxu0
        %v498 = vpop.f32.mrb[0].mxu0
        %v499 = vpop.f32.mrb[0].mxu0
        %500 = vdwg.mxu0
        %v501 = vadd.f32 %v496, %v379
        %v502 = vsel %vm382, %v501, -inf
        %v503 = vrot.slane %v502, 4
        %v504 = vmax.f32 %v502, %v503
        %v505 = vrot.slane %v504, 2
        %v506 = vmax.f32 %v504, %v505
        %v507 = vrot.slane %v506, 1
        %v508 = vmax.f32 %v506, %v507
        %v509 = vsub.f32 %v501, %v508
        %v510 = vmul.f32 %v509, 1.442695
        %v511 = vpow.pop %v510
        %v512 = vsel %vm382, %v511, 0.0
        %v513 = vrot.slane %v512, 4
        %v514 = vadd.f32 %v512, %v513
        %v515 = vrot.slane %v514, 2
        %v516 = vadd.f32 %v514, %v515
        %v517 = vrot.slane %v516, 1
        %v518 = vadd.f32 %v516, %v517
        %v519 = vrcp.pop %v518
        %v520 = vmul.f32 %v511, %v519
        %v521 = vsel %vm382, %v496, 0.0
        %522 = vadd.xlane.f32.xlu0 %v521
        %v523 = vpop.xlane.xlu0 %522
        %v524 = vmul.f32 %v523, 0.015625
        %v525 = vadd.f32 %v524, %v315
        %v526 = vsel %vm407, %v525, -inf
        %v527 = vrot.slane %v526, 4
        %v528 = vmax.f32 %v526, %v527
        %v529 = vrot.slane %v528, 2
        %v530 = vmax.f32 %v528, %v529
        %v531 = vrot.slane %v530, 1
        %v532 = vmax.f32 %v530, %v531
        %v533 = vsub.f32 %v525, %v532
        %v534 = vmul.f32 %v533, 1.442695
        %v535 = vpow.pop %v534
        %v536 = vsel %vm407, %v535, 0.0
        %v537 = vrot.slane %v536, 4
        %v538 = vadd.f32 %v536, %v537
        %v539 = vrot.slane %v538, 2
        %v540 = vadd.f32 %v538, %v539
        %v541 = vrot.slane %v540, 1
        %v542 = vadd.f32 %v540, %v541
        %v543 = vrcp.pop %v542
        %v544 = vmul.f32 %v535, %v543
        %s545 = scalar_lea.vmem %s310, 8
        %546 = vst.msk [vmem:[%s545] sm:$0xff] %vm407, %v544
        %548 = vset.pattern.permute.xlu0 0
        %549 = vperm.xlu0 %548, %v544
        %v550 = vpop.permute.xlu0 %549
        %v552 = vmul.f32 %v520, %v550
        %v553 = vsel %vm382, %v552, 0.0
        %v554 = vrot.slane %v553, 4
        %v555 = vadd.f32 %v553, %v554
        %v556 = vrot.slane %v555, 2
        %v557 = vadd.f32 %v555, %v556
        %v558 = vrot.slane %v557, 1
        %v559 = vadd.f32 %v557, %v558
        %560 = vst.msk [vmem:[#allocation2 + $0x8] sm:$0xff] %vm382, %v520
        %561 = vst.msk [vmem:[#allocation2 + $0x11] sm:$0x1] %vm442, %v559
        %v562 = vld [vmem:[#allocation2] sm:$0xff]
        %v563 = vld [vmem:[#allocation2 + $0x8] sm:$0xff]
        %v564 = vld [vmem:[#allocation2 + $0x10] sm:$0x3]
        %v565 = vpack.c.bf16 %v563, %v562
        %v566 = vpack.c.bf16 %v564, %v564
        %v567 = vld [vmem:[#allocation6] sm:$0xff]
        %v568 = vld [vmem:[#allocation6 + $0x8] sm:$0xff]
        %v569 = vld [vmem:[#allocation6 + $0x10] sm:$0xff]
        %v570 = vld [vmem:[#allocation6 + $0x18] sm:$0xff]
        %v571 = vld [vmem:[#allocation6 + $0x20] sm:$0xff]
        %v572 = vld [vmem:[#allocation6 + $0x28] sm:$0xff]
        %v573 = vld [vmem:[#allocation6 + $0x30] sm:$0xff]
        %v574 = vld [vmem:[#allocation6 + $0x38] sm:$0xff]
        %v583 = vunpack.c.l.b16 %v567
        %v584 = vunpack.c.h.b16 %v567
        %v585 = vunpack.c.l.b16 %v568
        %v586 = vunpack.c.h.b16 %v568
        %v587 = vunpack.c.l.b16 %v569
        %v588 = vunpack.c.h.b16 %v569
        %v589 = vunpack.c.l.b16 %v570
        %v590 = vunpack.c.h.b16 %v570
        %v591 = vunpack.c.l.b16 %v571
        %v592 = vunpack.c.h.b16 %v571
        %v593 = vunpack.c.l.b16 %v572
        %v594 = vunpack.c.h.b16 %v572
        %v595 = vunpack.c.l.b16 %v573
        %v596 = vunpack.c.h.b16 %v573
        %v597 = vunpack.c.l.b16 %v574
        %v598 = vunpack.c.h.b16 %v574
        %v599 = vpack.c.b16 %v585, %v583
        %v600 = vpack.c.b16 %v586, %v584
        %v601 = vpack.c.b16 %v589, %v587
        %v602 = vpack.c.b16 %v590, %v588
        %v603 = vpack.c.b16 %v593, %v591
        %v604 = vpack.c.b16 %v594, %v592
        %v605 = vpack.c.b16 %v597, %v595
        %v606 = vpack.c.b16 %v598, %v596
        %v616 = vsel %vm382, %v565, 0
        %v619 = vsel %vm382, %v566, 0
        %621 = vmatprep.subr.bf16.mxu0 %v600
        %622 = vmatpush1.bf16.msra.mxu0 %v599
        %623 = vmatprep.subr.bf16.mxu0 %v602
        %624 = vmatpush1.bf16.msra.mxu0 %v601
        %625 = vmatprep.subr.bf16.mxu0 %v604
        %626 = vmatpush1.bf16.msra.mxu0 %v603
        %627 = vmatprep.subr.bf16.mxu0 %v606
        %628 = vmatpush1.bf16.msra.mxu0 %v605
        %629 = vmatprep.subr.bf16.mxu0 0
        %630 = vmatpush1.bf16.msra.mxu0 0
        %631 = vmatprep.subr.bf16.mxu0 0
        %632 = vmatpush1.bf16.msra.mxu0 0
        %633 = vmatprep.subr.bf16.mxu0 0
        %634 = vmatpush1.bf16.msra.mxu0 0
        %635 = vmatprep.subr.bf16.mxu0 0
        %636 = vmatpush1.bf16.msra.mxu0 0
        %637 = vmatprep.subr.bf16.mxu0 0
        %638 = vmatpush1.bf16.msra.mxu0 0
        %639 = vmatprep.subr.bf16.mxu0 0
        %640 = vmatpush1.bf16.msra.mxu0 0
        %641 = vmatprep.subr.bf16.mxu0 0
        %642 = vmatpush1.bf16.msra.mxu0 0
        %643 = vmatprep.subr.bf16.mxu0 0
        %644 = vmatpush1.bf16.msra.mxu0 0
        %645 = vmatprep.subr.bf16.mxu0 0
        %646 = vmatpush1.bf16.msra.mxu0 0
        %647 = vmatprep.subr.bf16.mxu0 0
        %648 = vmatpush1.bf16.msra.mxu0 0
        %649 = vmatprep.subr.bf16.mxu0 0
        %650 = vmatpush1.bf16.msra.mxu0 0
        %651 = vmatprep.subr.bf16.mxu0 0
        %652 = vmatpush1.bf16.msra.mxu0 0
        %653 = vmatprep.mubr.bf16.mxu0 0
        %654 = vmatmul.mubr.bf16.gmra.mrb[0].mxu0 %v616
        %v655 = vpop.f32.mrb[0].mxu0
        %v656 = vadd.f32 0.0, %v655
        %v657 = vpop.f32.mrb[0].mxu0
        %v658 = vadd.f32 0.0, %v657
        %v659 = vpop.f32.mrb[0].mxu0
        %v660 = vadd.f32 0.0, %v659
        %v661 = vpop.f32.mrb[0].mxu0
        %v662 = vadd.f32 0.0, %v661
        %663 = vmatprep.mubr.bf16.mxu0 0
        %664 = vmatmul.mubr.bf16.gmra.mrb[0].mxu0 %v619
        %v665 = vpop.f32.mrb[0].mxu0
        %v666 = vadd.f32 0.0, %v665
        %v667 = vpop.f32.mrb[0].mxu0
        %v668 = vadd.f32 0.0, %v667
        %v669 = vpop.f32.mrb[0].mxu0
        %v670 = vpop.f32.mrb[0].mxu0
        %671 = vdwg.mxu0
        %672 = vst [vmem:[%s289] sm:$0xff] %v656
        %673 = vst [vmem:[%s289 + $0x8] sm:$0xff] %v658
        %v676 = vcombine.low %v666, %v668
        %v678 = vunpack.c.l.s4 1966171168
        %v679 = vunpack.c.0.s8 %v678
        %v680 = vlaneseq
        %v681 = vshrl.u32 %v680, 7
        %v682 = vsub.s32 %v679, %v681
        %v683 = vrot.slane %v676, %v682
        %v685 = vunpack.c.l.s4 1966171168
        %v686 = vunpack.c.0.s8 %v685
        %v687 = vlaneseq
        %v688 = vshrl.u32 %v687, 7
        %v689 = vsub.s32 %v686, %v688
        %v690 = vrot.slane %v683, %v689
        %v692 = vlaneseq
        %vm693 = vcmp.ge.s32.totalorder %v692, 0
        %vm694 = vcmp.lt.s32.totalorder %v692, 256
        %vm695 = vmand %vm693, %vm694
        %696 = vst.msk [vmem:[%s303] sm:$0x3] %vm695, %v690
        %s697 = scalar_lea.vmem %s289, 16 [#allocation8]
        %698 = vst [vmem:[%s697] sm:$0xff] %v660
        %699 = vst [vmem:[%s697 + $0x8] sm:$0xff] %v662
        %v700 = vcombine.high %v683, %v683
        %v702 = vunpack.c.l.s4 1966171168
        %v703 = vunpack.c.0.s8 %v702
        %v704 = vlaneseq
        %v705 = vshrl.u32 %v704, 7
        %v706 = vsub.s32 %v703, %v705
        %v707 = vrot.slane %v700, %v706
        %s709 = scalar_lea.vmem %s303, 2 [#allocation9]
        %710 = vst.msk [vmem:[%s709] sm:$0x3] %vm695, %v707
        %s711 = sand.u32 %s125, 1
        %s712 = scalar_lea.sflag [#allocation5], %s711
        %s713 = sand.u32 %s125, 1
        %s714 = smul.addr %s713, 32
        %s715 = scalar_lea.vmem [#allocation8], %s714
        %s716 = smul.u32 2, %s28
        %p717 = scmp.lt.s32.totalorder %s716, 3
        %s718 = scalar_select %p717, %s716, 3
        %s719 = smul.addr %s718, 8
        %s720 = scalar_lea.vmem %s5, %s719
        %s721 = sand.u32 %s177, 1
        %s722 = scalar_lea.sflag [#allocation10], %s721
        %s723 = sand.u32 %s177, 1
        %s724 = smul.addr %s723, 4
        %s725 = scalar_lea.vmem [#allocation9], %s724
        // Predicated region
        $region45: #{tpu_custom_call.1} parent=35 // pred_check
          %p726 = pneg %p135
        $region46: #{tpu_custom_call.1} parent=35 // pred_check_branch
          %728 = sbr.rel (%p726) target = $region48
        $region47: #{tpu_custom_call.1} parent=35 // pred_region
          %s729 = smul.u32 2, %s28
          %s731 = ssub.s32 512, 512
          %732 = vsyncadd %s712, %s731
          %s733 = smul.addr %s729, 2
          %s734 = smul.addr %s733, 128
          %s735 = scalar_lea.hbm %s4, %s734
          %s736 = sshll.u32 %s715, 4
          %s737 = int_to_ptr.vmem [resolvable:$true] %s736
          %742 = dma.vmem_to_hbm [thread:$0]  %s737, 512, %s735, %s712, 256, 256, 16
        $region48: #{tpu_custom_call.1} parent=35 // pred_fallthru
          _
        // Predicated region
        $region49: #{tpu_custom_call.1} parent=35 // pred_check
          %p743 = pneg %p161
        $region50: #{tpu_custom_call.1} parent=35 // pred_check_branch
          %745 = sbr.rel (%p743) target = $region52
        $region51: #{tpu_custom_call.1} parent=35 // pred_region
          %s746 = smul.u32 2, %s28
        $region52: #{tpu_custom_call.1} parent=35 // pred_fallthru
          _
        // Predicated region
        $region53: #{tpu_custom_call.1} parent=35 // pred_check
          %p747 = pneg %p187
        $region54: #{tpu_custom_call.1} parent=35 // pred_check_branch
          %749 = sbr.rel (%p747) target = $region56
        $region55: #{tpu_custom_call.1} parent=35 // pred_region
          %s750 = smul.u32 2, %s28
          %s752 = ssub.s32 64, 64
          %753 = vsyncadd %s722, %s752
          %s754 = smul.addr %s750, 2
          %s755 = smul.addr %s754, 16
          %s756 = scalar_lea.hbm %s6, %s755
          %s757 = sshll.u32 %s725, 4
          %s758 = int_to_ptr.vmem [resolvable:$true] %s757
          %763 = dma.vmem_to_hbm [thread:$0]  %s758, 64, %s756, %s722, 32, 32, 2
        $region56: #{tpu_custom_call.1} parent=35 // pred_fallthru
          _
      $region36: #{tpu_custom_call.1} parent=5 // pred_fallthru
        _
      %p764 = scmp.le.s32.totalorder 2, %s23
      // Predicated region
      $region57: #{tpu_custom_call.1} parent=5 // pred_check
        %p765 = pneg %p764
      $region58: #{tpu_custom_call.1} parent=5 // pred_check_branch
        %767 = sbr.rel (%p765) target = $region60
      $region59: #{tpu_custom_call.1} parent=5 // pred_region
        %s768 = ssub.s32 %s23, 2
        // Predicated region
        $region61: #{tpu_custom_call.1} parent=59 // pred_check
          %p769 = pneg %p141
        $region62: #{tpu_custom_call.1} parent=59 // pred_check_branch
          %771 = sbr.rel (%p769) target = $region64
        $region63: #{tpu_custom_call.1} parent=59 // pred_region
          %s772 = sand.u32 %s126, 1
          %s773 = scalar_lea.sflag [#allocation5], %s772
          %s774 = sand.u32 %s126, 1
          %s775 = smul.addr %s774, 32
          %s776 = scalar_lea.vmem [#allocation8], %s775
          %777 = dma.done %s773, 512
        $region64: #{tpu_custom_call.1} parent=59 // pred_fallthru
          _
        // Predicated region
        $region65: #{tpu_custom_call.1} parent=59 // pred_check
          %p778 = pneg %p167
        $region66: #{tpu_custom_call.1} parent=59 // pred_check_branch
          %780 = sbr.rel (%p778) target = $region68
        $region67: #{tpu_custom_call.1} parent=59 // pred_region
          %s781 = smul.u32 2, %s29
          %p782 = scmp.lt.s32.totalorder %s781, 3
          %s783 = scalar_select %p782, %s781, 3
          %s784 = smul.addr %s783, 8
          %s785 = scalar_lea.vmem %s5, %s784
        $region68: #{tpu_custom_call.1} parent=59 // pred_fallthru
          _
        // Predicated region
        $region69: #{tpu_custom_call.1} parent=59 // pred_check
          %p786 = pneg %p193
        $region70: #{tpu_custom_call.1} parent=59 // pred_check_branch
          %788 = sbr.rel (%p786) target = $region72
        $region71: #{tpu_custom_call.1} parent=59 // pred_region
          %s789 = sand.u32 %s178, 1
          %s790 = scalar_lea.sflag [#allocation10], %s789
          %s791 = sand.u32 %s178, 1
          %s792 = smul.addr %s791, 4
          %s793 = scalar_lea.vmem [#allocation9], %s792
          %794 = dma.done %s790, 64
        $region72: #{tpu_custom_call.1} parent=59 // pred_fallthru
          _
      $region60: #{tpu_custom_call.1} parent=5 // pred_fallthru
        _
    $region6: #{tpu_custom_call.1} parent=1 // loop_footer
      %s27 = sadd.s32 1, %s23
    $region7: #{tpu_custom_call.1} parent=1 // loop_footer_branch
      %22 = sbr.rel target = $region3
    $region8: #{tpu_custom_call.1} parent=1 // loop_exit
      _
    %795 = vsyncpa [#allocation4], 1
    %s796 = scalar_lea.sflag [#allocation4], 1
    %797 = vsyncpa %s796, 1
    %798 = vsyncpa [#allocation7], 1
    %799 = vsyncpa [#allocation5], 1
    %s800 = scalar_lea.sflag [#allocation5], 1
    %801 = vsyncpa %s800, 1
    %802 = vsyncpa [#allocation10], 1
    %s803 = scalar_lea.sflag [#allocation10], 1
    %804 = vsyncpa %s803, 1

// kernel: tpu_custom_call.1
$region0: #{tpu_custom_call.1}
  #allocation0 [shape = 'u32[]', space=smem, size = 0x4, offset = 0x4, fixed_abs, tag = 'smem constant byte address 0x4 - core index']
  #allocation1 [shape = 'u32[144,128]{1,0:T(1,128)}', space=vmem, size = 0x12000, scoped, tag = 'internal scratch']
  #allocation2 [shape = 'f32[18,64]{1,0:T(8,128)}', space=vmem, size = 0x3000, scoped, tag = 'scratch operand']
  %s0 = inlined_call_operand.hbm [shape: bf16[4,32,64], index: 0, kind: input, shape index: {}]
  %s1 = inlined_call_operand.vmem [shape: bf16[8,32], index: 1, kind: input, shape index: {}]
  %s2 = inlined_call_operand.vmem [shape: f32[8,1], index: 2, kind: input, shape index: {}]
  %s3 = inlined_call_operand.hbm [shape: bf16[64,256], index: 3, kind: input, shape index: {}]
  %s4 = inlined_call_operand.hbm [shape: f32[4,8,256], index: 4, kind: output, shape index: {0}]
  %s5 = inlined_call_operand.vmem [shape: f32[4,8,1], index: 5, kind: output, shape index: {1}]
  %s6 = inlined_call_operand.hbm [shape: f32[4,1,256], index: 6, kind: output, shape index: {2}]
  %7 = xla_tuple %s4, %s5, %s6
  %s8 = sld [smem:[#allocation0]]
  $region73: #{tpu_custom_call.1} parent=0
    _
  %s10 = ssub.s32 1, %s8
  %s11 = scalar_select 0, %s10, %s8
  $region1: #{tpu_custom_call.1} parent=0
    #allocation3 [shape = 'u8[32768]{0}', space=vmem, size = 0x8000, scoped, tag = 'input window, operand 0']
    #allocation4 [shape = 's32[2]{0}', space=sflag, size = 0x8, scoped, tag = 'scoped memory for tpu_custom_call.1']
    #allocation5 [shape = 's32[2]{0}', space=sflag, size = 0x8, scoped, tag = 'scoped memory for tpu_custom_call.1']
    #allocation6 [shape = 'u8[32768]{0}', space=vmem, size = 0x8000, scoped, tag = 'input window, operand 3, single buffered']
    #allocation7 [shape = 's32[1]{0}', space=sflag, size = 0x4, scoped, tag = 'scoped memory for tpu_custom_call.1']
    #allocation8 [shape = 'u8[32768]{0}', space=vmem, size = 0x8000, scoped, tag = 'output window, operand 0']
    #allocation9 [shape = 'u8[4096]{0}', space=vmem, size = 0x1000, scoped, tag = 'output window, operand 2']
    #allocation10 [shape = 's32[2]{0}', space=sflag, size = 0x8, scoped, tag = 'scoped memory for tpu_custom_call.1']
    %12 = vsyncpa [#allocation4], 0
    %s13 = scalar_lea.sflag [#allocation4], 1
    %14 = vsyncpa %s13, 0
    %15 = vsyncpa [#allocation7], 0
    %16 = vsyncpa [#allocation5], 0
    %s17 = scalar_lea.sflag [#allocation5], 1
    %18 = vsyncpa %s17, 0
    %19 = vsyncpa [#allocation10], 0
    %s20 = scalar_lea.sflag [#allocation10], 1
    %21 = vsyncpa %s20, 0
    loop: start=0, step=1, limit=4
    $region2: #{tpu_custom_call.1} parent=1 // loop_pre_header
      _
    $region3: #{tpu_custom_call.1} parent=1 // loop_header
      %s23 = sphi 0, %s27
      %p24 = scmp.ge.s32.totalorder %s23, 4
      %s33 = sphi 0, %s35
      %s36 = sphi 0, %s33
      %s37 = sphi 0, %s36
      %s53 = sphi 0, %s37
      %s57 = sphi 0, %s57
      %s59 = sphi 0, %s57
      %s60 = sphi 0, %s59
      %s74 = sphi 0, %s60
      %s78 = sphi 0, %s78
      %s80 = sphi 0, %s78
      %s81 = sphi 0, %s80
      %s95 = sphi 0, %s81
      %s99 = sphi 0, %s99
      %s101 = sphi 0, %s99
      %s102 = sphi 0, %s101
      %s116 = sphi 0, %s102
      %s122 = sphi 0, %s124
      %s125 = sphi 0, %s122
      %s126 = sphi 0, %s125
      %s142 = sphi 0, %s126
      %s148 = sphi 0, %s150
      %s151 = sphi 0, %s148
      %s152 = sphi 0, %s151
      %s168 = sphi 0, %s152
      %s174 = sphi 0, %s176
      %s177 = sphi 0, %s174
      %s178 = sphi 0, %s177
      %s194 = sphi 0, %s178
    $region4: #{tpu_custom_call.1} parent=1 // loop_header_branch
      %26 = sbr.rel (%p24) target = $region8
    $region5: #{tpu_custom_call.1} parent=1 // loop_body
      %s28 = ssub.s32 %s23, 1
      %s29 = ssub.s32 %s23, 2
      %s30 = sadd.s32 %s23, 1
      %s31 = ssub.s32 %s23, %s30
      %p32 = scmp.eq.s32.totalorder %s31, 0
      %s34 = sadd.s32 %s33, 1
      %s35 = scalar_select %p32, %s33, %s34
      %p38 = pneg %p32
      %p39 = scmp.eq.s32.totalorder %s23, 1
      %p40 = por %p38, %p39
      %p41 = scmp.ne.s32.totalorder %s33, %s36
      %p42 = scmp.eq.s32.totalorder %s23, 0
      %p43 = por %p41, %p42
      %p44 = scmp.ne.s32.totalorder %s33, %s36
      %p45 = scmp.eq.s32.totalorder %s28, 1
      %p46 = por %p44, %p45
      %p47 = scmp.ne.s32.totalorder %s36, %s37
      %p48 = scmp.eq.s32.totalorder %s28, 0
      %p49 = por %p47, %p48
      %p50 = scmp.ne.s32.totalorder %s36, %s37
      %p51 = scmp.eq.s32.totalorder %s29, 1
      %p52 = por %p50, %p51
      %p54 = scmp.ne.s32.totalorder %s37, %s53
      %p55 = scmp.eq.s32.totalorder %s29, 0
      %p56 = por %p54, %p55
      %s58 = sadd.s32 %s57, 1
      %p61 = scmp.eq.s32.totalorder %s23, 1
      %p62 = scmp.ne.s32.totalorder %s57, %s59
      %p63 = scmp.eq.s32.totalorder %s23, 0
      %p64 = por %p62, %p63
      %p65 = scmp.ne.s32.totalorder %s57, %s59
      %p66 = scmp.eq.s32.totalorder %s28, 1
      %p67 = por %p65, %p66
      %p68 = scmp.ne.s32.totalorder %s59, %s60
      %p69 = scmp.eq.s32.totalorder %s28, 0
      %p70 = por %p68, %p69
      %p71 = scmp.ne.s32.totalorder %s59, %s60
      %p72 = scmp.eq.s32.totalorder %s29, 1
      %p73 = por %p71, %p72
      %p75 = scmp.ne.s32.totalorder %s60, %s74
      %p76 = scmp.eq.s32.totalorder %s29, 0
      %p77 = por %p75, %p76
      %s79 = sadd.s32 %s78, 1
      %p82 = scmp.eq.s32.totalorder %s23, 1
      %p83 = scmp.ne.s32.totalorder %s78, %s80
      %p84 = scmp.eq.s32.totalorder %s23, 0
      %p85 = por %p83, %p84
      %p86 = scmp.ne.s32.totalorder %s78, %s80
      %p87 = scmp.eq.s32.totalorder %s28, 1
      %p88 = por %p86, %p87
      %p89 = scmp.ne.s32.totalorder %s80, %s81
      %p90 = scmp.eq.s32.totalorder %s28, 0
      %p91 = por %p89, %p90
      %p92 = scmp.ne.s32.totalorder %s80, %s81
      %p93 = scmp.eq.s32.totalorder %s29, 1
      %p94 = por %p92, %p93
      %p96 = scmp.ne.s32.totalorder %s81, %s95
      %p97 = scmp.eq.s32.totalorder %s29, 0
      %p98 = por %p96, %p97
      %s100 = sadd.s32 %s99, 1
      %p103 = scmp.eq.s32.totalorder %s23, 1
      %p104 = scmp.ne.s32.totalorder %s99, %s101
      %p105 = scmp.eq.s32.totalorder %s23, 0
      %p106 = por %p104, %p105
      %p107 = scmp.ne.s32.totalorder %s99, %s101
      %p108 = scmp.eq.s32.totalorder %s28, 1
      %p109 = por %p107, %p108
      %p110 = scmp.ne.s32.totalorder %s101, %s102
      %p111 = scmp.eq.s32.totalorder %s28, 0
      %p112 = por %p110, %p111
      %p113 = scmp.ne.s32.totalorder %s101, %s102
      %p114 = scmp.eq.s32.totalorder %s29, 1
      %p115 = por %p113, %p114
      %p117 = scmp.ne.s32.totalorder %s102, %s116
      %p118 = scmp.eq.s32.totalorder %s29, 0
      %p119 = por %p117, %p118
      %s120 = ssub.s32 %s23, %s30
      %p121 = scmp.eq.s32.totalorder %s120, 0
      %s123 = sadd.s32 %s122, 1
      %s124 = scalar_select %p121, %s122, %s123
      %p127 = pneg %p121
      %p128 = scmp.eq.s32.totalorder %s23, 1
      %p129 = por %p127, %p128
      %p130 = scmp.ne.s32.totalorder %s122, %s125
      %p131 = scmp.eq.s32.totalorder %s23, 0
      %p132 = por %p130, %p131
      %p133 = scmp.ne.s32.totalorder %s122, %s125
      %p134 = scmp.eq.s32.totalorder %s28, 1
      %p135 = por %p133, %p134
      %p136 = scmp.ne.s32.totalorder %s125, %s126
      %p137 = scmp.eq.s32.totalorder %s28, 0
      %p138 = por %p136, %p137
      %p139 = scmp.ne.s32.totalorder %s125, %s126
      %p140 = scmp.eq.s32.totalorder %s29, 1
      %p141 = por %p139, %p140
      %p143 = scmp.ne.s32.totalorder %s126, %s142
      %p144 = scmp.eq.s32.totalorder %s29, 0
      %p145 = por %p143, %p144
      %s146 = ssub.s32 %s23, %s30
      %p147 = scmp.eq.s32.totalorder %s146, 0
      %s149 = sadd.s32 %s148, 1
      %s150 = scalar_select %p147, %s148, %s149
      %p153 = pneg %p147
      %p154 = scmp.eq.s32.totalorder %s23, 1
      %p155 = por %p153, %p154
      %p156 = scmp.ne.s32.totalorder %s148, %s151
      %p157 = scmp.eq.s32.totalorder %s23, 0
      %p158 = por %p156, %p157
      %p159 = scmp.ne.s32.totalorder %s148, %s151
      %p160 = scmp.eq.s32.totalorder %s28, 1
      %p161 = por %p159, %p160
      %p162 = scmp.ne.s32.totalorder %s151, %s152
      %p163 = scmp.eq.s32.totalorder %s28, 0
      %p164 = por %p162, %p163
      %p165 = scmp.ne.s32.totalorder %s151, %s152
      %p166 = scmp.eq.s32.totalorder %s29, 1
      %p167 = por %p165, %p166
      %p169 = scmp.ne.s32.totalorder %s152, %s168
      %p170 = scmp.eq.s32.totalorder %s29, 0
      %p171 = por %p169, %p170
      %s172 = ssub.s32 %s23, %s30
      %p173 = scmp.eq.s32.totalorder %s172, 0
      %s175 = sadd.s32 %s174, 1
      %s176 = scalar_select %p173, %s174, %s175
      %p179 = pneg %p173
      %p180 = scmp.eq.s32.totalorder %s23, 1
      %p181 = por %p179, %p180
      %p182 = scmp.ne.s32.totalorder %s174, %s177
      %p183 = scmp.eq.s32.totalorder %s23, 0
      %p184 = por %p182, %p183
      %p185 = scmp.ne.s32.totalorder %s174, %s177
      %p186 = scmp.eq.s32.totalorder %s28, 1
      %p187 = por %p185, %p186
      %p188 = scmp.ne.s32.totalorder %s177, %s178
      %p189 = scmp.eq.s32.totalorder %s28, 0
      %p190 = por %p188, %p189
      %p191 = scmp.ne.s32.totalorder %s177, %s178
      %p192 = scmp.eq.s32.totalorder %s29, 1
      %p193 = por %p191, %p192
      %p195 = scmp.ne.s32.totalorder %s178, %s194
      %p196 = scmp.eq.s32.totalorder %s29, 0
      %p197 = por %p195, %p196
      %p198 = scmp.le.s32.totalorder 1, %s23
      %p199 = scmp.lt.s32.totalorder %s23, 3
      %p200 = pnand %p198, %p199
      %p201 = pneg %p200
      // Predicated region
      $region9: #{tpu_custom_call.1} parent=5 // pred_check
        _
      $region10: #{tpu_custom_call.1} parent=5 // pred_check_branch
        %203 = sbr.rel (%p200) target = $region12
      $region11: #{tpu_custom_call.1} parent=5 // pred_region
        %s204 = ssub.s32 %s23, 1
        // Predicated region
        $region13: #{tpu_custom_call.1} parent=11 // pred_check
          %p205 = pneg %p70
        $region14: #{tpu_custom_call.1} parent=11 // pred_check_branch
          %207 = sbr.rel (%p205) target = $region16
        $region15: #{tpu_custom_call.1} parent=11 // pred_region
          _
        $region16: #{tpu_custom_call.1} parent=11 // pred_fallthru
          _
        // Predicated region
        $region17: #{tpu_custom_call.1} parent=11 // pred_check
          %p208 = pneg %p91
        $region18: #{tpu_custom_call.1} parent=11 // pred_check_branch
          %210 = sbr.rel (%p208) target = $region20
        $region19: #{tpu_custom_call.1} parent=11 // pred_region
          _
        $region20: #{tpu_custom_call.1} parent=11 // pred_fallthru
          _
        // Predicated region
        $region21: #{tpu_custom_call.1} parent=11 // pred_check
          %p211 = pneg %p112
        $region22: #{tpu_custom_call.1} parent=11 // pred_check_branch
          %213 = sbr.rel (%p211) target = $region24
        $region23: #{tpu_custom_call.1} parent=11 // pred_region
          %s215 = ssub.s32 1024, 1024
          %216 = vsyncadd [#allocation7], %s215
          %s217 = sshll.u32 [#allocation6], 4
          %s218 = int_to_ptr.vmem [resolvable:$true] %s217
          %223 = dma.hbm_to_vmem [thread:$0]  %s3, 1024, %s218, [#allocation7], 128, 128, 8
        $region24: #{tpu_custom_call.1} parent=11 // pred_fallthru
          _
      $region12: #{tpu_custom_call.1} parent=5 // pred_fallthru
        _
      %p224 = scmp.lt.s32.totalorder %s23, 2
      // Predicated region
      $region25: #{tpu_custom_call.1} parent=5 // pred_check
        %p225 = pneg %p224
      $region26: #{tpu_custom_call.1} parent=5 // pred_check_branch
        %227 = sbr.rel (%p225) target = $region28
      $region27: #{tpu_custom_call.1} parent=5 // pred_region
        // Predicated region
        $region29: #{tpu_custom_call.1} parent=27 // pred_check
          %p228 = pneg %p43
        $region30: #{tpu_custom_call.1} parent=27 // pred_check_branch
          %230 = sbr.rel (%p228) target = $region32
        $region31: #{tpu_custom_call.1} parent=27 // pred_region
          %s231 = sand.u32 %s33, 1
          %s232 = scalar_lea.sflag [#allocation4], %s231
          %s233 = sand.u32 %s33, 1
          %s234 = smul.addr %s233, 32
          %s235 = scalar_lea.vmem [#allocation3], %s234
          %s236 = smul.u32 2, %s23
          %s238 = ssub.s32 512, 512
          %239 = vsyncadd %s232, %s238
          %s240 = smul.addr %s236, 4
          %s241 = smul.addr %s240, 64
          %s242 = scalar_lea.hbm %s0, %s241
          %s243 = sshll.u32 %s235, 4
          %s244 = int_to_ptr.vmem [resolvable:$true] %s243
          %249 = dma.hbm_to_vmem [thread:$0]  %s242, 512, %s244, %s232, 64, 64, 4
        $region32: #{tpu_custom_call.1} parent=27 // pred_fallthru
          _
      $region28: #{tpu_custom_call.1} parent=5 // pred_fallthru
        _
      %p250 = scmp.le.s32.totalorder 1, %s23
      %p251 = scmp.lt.s32.totalorder %s23, 3
      %p252 = pnand %p250, %p251
      %p253 = pneg %p252
      // Predicated region
      $region33: #{tpu_custom_call.1} parent=5 // pred_check
        _
      $region34: #{tpu_custom_call.1} parent=5 // pred_check_branch
        %255 = sbr.rel (%p252) target = $region36
      $region35: #{tpu_custom_call.1} parent=5 // pred_region
        %s256 = ssub.s32 %s23, 1
        %s257 = sand.u32 %s36, 1
        %s258 = scalar_lea.sflag [#allocation4], %s257
        %s259 = sand.u32 %s36, 1
        %s260 = smul.addr %s259, 32
        %s261 = scalar_lea.vmem [#allocation3], %s260
        // Predicated region
        $region37: #{tpu_custom_call.1} parent=35 // pred_check
          %p262 = pneg %p49
        $region38: #{tpu_custom_call.1} parent=35 // pred_check_branch
          %264 = sbr.rel (%p262) target = $region40
        $region39: #{tpu_custom_call.1} parent=35 // pred_region
          %265 = dma.done %s258, 512
        $region40: #{tpu_custom_call.1} parent=35 // pred_fallthru
          _
        // Predicated region
        $region41: #{tpu_custom_call.1} parent=35 // pred_check
          %p266 = pneg %p112
        $region42: #{tpu_custom_call.1} parent=35 // pred_check_branch
          %268 = sbr.rel (%p266) target = $region44
        $region43: #{tpu_custom_call.1} parent=35 // pred_region
          %269 = dma.done [#allocation7], 1024
        $region44: #{tpu_custom_call.1} parent=35 // pred_fallthru
          _
        %s270 = sand.u32 %s36, 1
        %s271 = scalar_lea.sflag [#allocation4], %s270
        %s272 = sand.u32 %s36, 1
        %s273 = smul.addr %s272, 32
        %s274 = scalar_lea.vmem [#allocation3], %s273
        %p275 = pneg %p49
        %p276 = pneg %p46
        %p277 = pneg %p70
        %p278 = pneg %p67
        %p279 = pneg %p91
        %p280 = pneg %p88
        %p281 = pneg %p112
        %p282 = pneg %p109
        %p283 = pneg %p138
        %p284 = pneg %p135
        %s285 = sand.u32 %s125, 1
        %s286 = scalar_lea.sflag [#allocation5], %s285
        %s287 = sand.u32 %s125, 1
        %s288 = smul.addr %s287, 32
        %s289 = scalar_lea.vmem [#allocation8], %s288
        %p290 = pneg %p164
        %p291 = pneg %p161
        %s292 = smul.u32 2, %s28
        %p293 = scmp.lt.s32.totalorder %s292, 3
        %s294 = scalar_select %p293, %s292, 3
        %s295 = smul.addr %s294, 8
        %s296 = scalar_lea.vmem %s5, %s295
        %p297 = pneg %p190
        %p298 = pneg %p187
        %s299 = sand.u32 %s177, 1
        %s300 = scalar_lea.sflag [#allocation10], %s299
        %s301 = sand.u32 %s177, 1
        %s302 = smul.addr %s301, 4
        %s303 = scalar_lea.vmem [#allocation9], %s302
        %s304 = smul.u32 2, %s28
        %s305 = smul.u32 2, %s28
        %s306 = smul.u32 2, %s28
        %p307 = scmp.lt.s32.totalorder %s306, 3
        %s308 = scalar_select %p307, %s306, 3
        %s309 = smul.addr %s308, 8
        %s310 = scalar_lea.vmem %s5, %s309
        %s311 = smul.u32 2, %s28
        %s312 = smul.u32 2, %s28
        %v314 = vld [vmem:[%s1] sm:$0xf]
        %v315 = vld [vmem:[%s2] sm:$0xff]
        %v316 = vld [vmem:[%s261] sm:$0xf]
        %v317 = vld [vmem:[%s261 + $0x4] sm:$0xf]
        %v318 = vld [vmem:[%s261 + $0x8] sm:$0xf]
        %v319 = vld [vmem:[%s261 + $0xc] sm:$0xf]
        %v324 = vunpack.c.l.b16 %v316
        %v325 = vunpack.c.l.b16 %v317
        %v326 = vunpack.c.l.b16 %v318
        %v327 = vunpack.c.l.b16 %v319
        %v328 = vpack.c.b16 %v325, %v324
        %v329 = vpack.c.b16 %v327, %v326
        %vm332 = vcmask 261120
        %v334 = vsel %vm332, %v314, 0
        %336 = vmatprep.subr.bf16.mxu0 0
        %337 = vmatpush1.bf16.msra.mxu0 %v328
        %338 = vmatprep.subr.bf16.mxu0 0
        %339 = vmatpush1.bf16.msra.mxu0 %v329
        %340 = vmatprep.subr.bf16.mxu0 0
        %341 = vmatpush1.bf16.msra.mxu0 0
        %342 = vmatprep.subr.bf16.mxu0 0
        %343 = vmatpush1.bf16.msra.mxu0 0
        %344 = vmatprep.subr.bf16.mxu0 0
        %345 = vmatpush1.bf16.msra.mxu0 0
        %346 = vmatprep.subr.bf16.mxu0 0
        %347 = vmatpush1.bf16.msra.mxu0 0
        %348 = vmatprep.subr.bf16.mxu0 0
        %349 = vmatpush1.bf16.msra.mxu0 0
        %350 = vmatprep.subr.bf16.mxu0 0
        %351 = vmatpush1.bf16.msra.mxu0 0
        %352 = vmatprep.subr.bf16.mxu0 0
        %353 = vmatpush1.bf16.msra.mxu0 0
        %354 = vmatprep.subr.bf16.mxu0 0
        %355 = vmatpush1.bf16.msra.mxu0 0
        %356 = vmatprep.subr.bf16.mxu0 0
        %357 = vmatpush1.bf16.msra.mxu0 0
        %358 = vmatprep.subr.bf16.mxu0 0
        %359 = vmatpush1.bf16.msra.mxu0 0
        %360 = vmatprep.subr.bf16.mxu0 0
        %361 = vmatpush1.bf16.msra.mxu0 0
        %362 = vmatprep.subr.bf16.mxu0 0
        %363 = vmatpush1.bf16.msra.mxu0 0
        %364 = vmatprep.subr.bf16.mxu0 0
        %365 = vmatpush1.bf16.msra.mxu0 0
        %366 = vmatprep.subr.bf16.mxu0 0
        %367 = vmatpush1.bf16.msra.mxu0 0
        %368 = vmatprep.mubr.bf16.mxu0 0
        %369 = vmatmul.mubr.bf16.gmra.mrb[0].mxu0 %v334
        %v370 = vpop.f32.mrb[0].mxu0
        %v371 = vadd.f32 0.0, %v370
        %v372 = vpop.f32.mrb[0].mxu0
        %v373 = vpop.f32.mrb[0].mxu0
        %v374 = vpop.f32.mrb[0].mxu0
        %375 = vdwg.mxu0
        %377 = vset.pattern.permute.xlu0 0
        %378 = vperm.xlu0 %377, %v315
        %v379 = vpop.permute.xlu0 %378
        %v381 = vadd.f32 %v371, %v379
        %vm382 = vcmask 523264
        %v383 = vsel %vm382, %v381, -inf
        %v384 = vrot.slane %v383, 4
        %v385 = vmax.f32 %v383, %v384
        %v386 = vrot.slane %v385, 2
        %v387 = vmax.f32 %v385, %v386
        %v388 = vrot.slane %v387, 1
        %v389 = vmax.f32 %v387, %v388
        %v390 = vsub.f32 %v381, %v389
        %v391 = vmul.f32 %v390, 1.442695
        %v392 = vpow.pop %v391
        %v393 = vsel %vm382, %v392, 0.0
        %v394 = vrot.slane %v393, 4
        %v395 = vadd.f32 %v393, %v394
        %v396 = vrot.slane %v395, 2
        %v397 = vadd.f32 %v395, %v396
        %v398 = vrot.slane %v397, 1
        %v399 = vadd.f32 %v397, %v398
        %v400 = vrcp.pop %v399
        %v401 = vmul.f32 %v392, %v400
        %v402 = vsel %vm382, %v371, 0.0
        %403 = vadd.xlane.f32.xlu0 %v402
        %v404 = vpop.xlane.xlu0 %403
        %v405 = vmul.f32 %v404, 0.015625
        %v406 = vadd.f32 %v405, %v315
        %vm407 = vcmask 7168
        %v408 = vsel %vm407, %v406, -inf
        %v409 = vrot.slane %v408, 4
        %v410 = vmax.f32 %v408, %v409
        %v411 = vrot.slane %v410, 2
        %v412 = vmax.f32 %v410, %v411
        %v413 = vrot.slane %v412, 1
        %v414 = vmax.f32 %v412, %v413
        %v415 = vsub.f32 %v406, %v414
        %v416 = vmul.f32 %v415, 1.442695
        %v417 = vpow.pop %v416
        %v418 = vsel %vm407, %v417, 0.0
        %v419 = vrot.slane %v418, 4
        %v420 = vadd.f32 %v418, %v419
        %v421 = vrot.slane %v420, 2
        %v422 = vadd.f32 %v420, %v421
        %v423 = vrot.slane %v422, 1
        %v424 = vadd.f32 %v422, %v423
        %v425 = vrcp.pop %v424
        %v426 = vmul.f32 %v417, %v425
        %427 = vst.msk [vmem:[%s310] sm:$0xff] %vm407, %v426
        %429 = vset.pattern.permute.xlu0 0
        %430 = vperm.xlu0 %429, %v426
        %v431 = vpop.permute.xlu0 %430
        %v433 = vmul.f32 %v401, %v431
        %v434 = vsel %vm382, %v433, 0.0
        %v435 = vrot.slane %v434, 4
        %v436 = vadd.f32 %v434, %v435
        %v437 = vrot.slane %v436, 2
        %v438 = vadd.f32 %v436, %v437
        %v439 = vrot.slane %v438, 1
        %v440 = vadd.f32 %v438, %v439
        %441 = vst.msk [vmem:[#allocation2] sm:$0xff] %vm382, %v401
        %vm442 = vcmask 516096
        %443 = vst.msk [vmem:[#allocation2 + $0x10] sm:$0x1] %vm442, %v440
        %s444 = scalar_lea.vmem %s261, 16 [#allocation3]
        %v445 = vld [vmem:[%s444] sm:$0xf]
        %v446 = vld [vmem:[%s444 + $0x4] sm:$0xf]
        %v447 = vld [vmem:[%s444 + $0x8] sm:$0xf]
        %v448 = vld [vmem:[%s444 + $0xc] sm:$0xf]
        %v453 = vunpack.c.l.b16 %v445
        %v454 = vunpack.c.l.b16 %v446
        %v455 = vunpack.c.l.b16 %v447
        %v456 = vunpack.c.l.b16 %v448
        %v457 = vpack.c.b16 %v454, %v453
        %v458 = vpack.c.b16 %v456, %v455
        %461 = vmatprep.subr.bf16.mxu0 0
        %462 = vmatpush1.bf16.msra.mxu0 %v457
        %463 = vmatprep.subr.bf16.mxu0 0
        %464 = vmatpush1.bf16.msra.mxu0 %v458
        %465 = vmatprep.subr.bf16.mxu0 0
        %466 = vmatpush1.bf16.msra.mxu0 0
        %467 = vmatprep.subr.bf16.mxu0 0
        %468 = vmatpush1.bf16.msra.mxu0 0
        %469 = vmatprep.subr.bf16.mxu0 0
        %470 = vmatpush1.bf16.msra.mxu0 0
        %471 = vmatprep.subr.bf16.mxu0 0
        %472 = vmatpush1.bf16.msra.mxu0 0
        %473 = vmatprep.subr.bf16.mxu0 0
        %474 = vmatpush1.bf16.msra.mxu0 0
        %475 = vmatprep.subr.bf16.mxu0 0
        %476 = vmatpush1.bf16.msra.mxu0 0
        %477 = vmatprep.subr.bf16.mxu0 0
        %478 = vmatpush1.bf16.msra.mxu0 0
        %479 = vmatprep.subr.bf16.mxu0 0
        %480 = vmatpush1.bf16.msra.mxu0 0
        %481 = vmatprep.subr.bf16.mxu0 0
        %482 = vmatpush1.bf16.msra.mxu0 0
        %483 = vmatprep.subr.bf16.mxu0 0
        %484 = vmatpush1.bf16.msra.mxu0 0
        %485 = vmatprep.subr.bf16.mxu0 0
        %486 = vmatpush1.bf16.msra.mxu0 0
        %487 = vmatprep.subr.bf16.mxu0 0
        %488 = vmatpush1.bf16.msra.mxu0 0
        %489 = vmatprep.subr.bf16.mxu0 0
        %490 = vmatpush1.bf16.msra.mxu0 0
        %491 = vmatprep.subr.bf16.mxu0 0
        %492 = vmatpush1.bf16.msra.mxu0 0
        %493 = vmatprep.mubr.bf16.mxu0 0
        %494 = vmatmul.mubr.bf16.gmra.mrb[0].mxu0 %v334
        %v495 = vpop.f32.mrb[0].mxu0
        %v496 = vadd.f32 0.0, %v495
        %v497 = vpop.f32.mrb[0].mxu0
        %v498 = vpop.f32.mrb[0].mxu0
        %v499 = vpop.f32.mrb[0].mxu0
        %500 = vdwg.mxu0
        %v501 = vadd.f32 %v496, %v379
        %v502 = vsel %vm382, %v501, -inf
        %v503 = vrot.slane %v502, 4
        %v504 = vmax.f32 %v502, %v503
        %v505 = vrot.slane %v504, 2
        %v506 = vmax.f32 %v504, %v505
        %v507 = vrot.slane %v506, 1
        %v508 = vmax.f32 %v506, %v507
        %v509 = vsub.f32 %v501, %v508
        %v510 = vmul.f32 %v509, 1.442695
        %v511 = vpow.pop %v510
        %v512 = vsel %vm382, %v511, 0.0
        %v513 = vrot.slane %v512, 4
        %v514 = vadd.f32 %v512, %v513
        %v515 = vrot.slane %v514, 2
        %v516 = vadd.f32 %v514, %v515
        %v517 = vrot.slane %v516, 1
        %v518 = vadd.f32 %v516, %v517
        %v519 = vrcp.pop %v518
        %v520 = vmul.f32 %v511, %v519
        %v521 = vsel %vm382, %v496, 0.0
        %522 = vadd.xlane.f32.xlu0 %v521
        %v523 = vpop.xlane.xlu0 %522
        %v524 = vmul.f32 %v523, 0.015625
        %v525 = vadd.f32 %v524, %v315
        %v526 = vsel %vm407, %v525, -inf
        %v527 = vrot.slane %v526, 4
        %v528 = vmax.f32 %v526, %v527
        %v529 = vrot.slane %v528, 2
        %v530 = vmax.f32 %v528, %v529
        %v531 = vrot.slane %v530, 1
        %v532 = vmax.f32 %v530, %v531
        %v533 = vsub.f32 %v525, %v532
        %v534 = vmul.f32 %v533, 1.442695
        %v535 = vpow.pop %v534
        %v536 = vsel %vm407, %v535, 0.0
        %v537 = vrot.slane %v536, 4
        %v538 = vadd.f32 %v536, %v537
        %v539 = vrot.slane %v538, 2
        %v540 = vadd.f32 %v538, %v539
        %v541 = vrot.slane %v540, 1
        %v542 = vadd.f32 %v540, %v541
        %v543 = vrcp.pop %v542
        %v544 = vmul.f32 %v535, %v543
        %s545 = scalar_lea.vmem %s310, 8
        %546 = vst.msk [vmem:[%s545] sm:$0xff] %vm407, %v544
        %548 = vset.pattern.permute.xlu0 0
        %549 = vperm.xlu0 %548, %v544
        %v550 = vpop.permute.xlu0 %549
        %v552 = vmul.f32 %v520, %v550
        %v553 = vsel %vm382, %v552, 0.0
        %v554 = vrot.slane %v553, 4
        %v555 = vadd.f32 %v553, %v554
        %v556 = vrot.slane %v555, 2
        %v557 = vadd.f32 %v555, %v556
        %v558 = vrot.slane %v557, 1
        %v559 = vadd.f32 %v557, %v558
        %560 = vst.msk [vmem:[#allocation2 + $0x8] sm:$0xff] %vm382, %v520
        %561 = vst.msk [vmem:[#allocation2 + $0x11] sm:$0x1] %vm442, %v559
        %v562 = vld [vmem:[#allocation2] sm:$0xff]
        %v563 = vld [vmem:[#allocation2 + $0x8] sm:$0xff]
        %v564 = vld [vmem:[#allocation2 + $0x10] sm:$0x3]
        %v565 = vpack.c.bf16 %v563, %v562
        %v566 = vpack.c.bf16 %v564, %v564
        %v567 = vld [vmem:[#allocation6] sm:$0xff]
        %v568 = vld [vmem:[#allocation6 + $0x8] sm:$0xff]
        %v569 = vld [vmem:[#allocation6 + $0x10] sm:$0xff]
        %v570 = vld [vmem:[#allocation6 + $0x18] sm:$0xff]
        %v571 = vld [vmem:[#allocation6 + $0x20] sm:$0xff]
        %v572 = vld [vmem:[#allocation6 + $0x28] sm:$0xff]
        %v573 = vld [vmem:[#allocation6 + $0x30] sm:$0xff]
        %v574 = vld [vmem:[#allocation6 + $0x38] sm:$0xff]
        %v583 = vunpack.c.l.b16 %v567
        %v584 = vunpack.c.h.b16 %v567
        %v585 = vunpack.c.l.b16 %v568
        %v586 = vunpack.c.h.b16 %v568
        %v587 = vunpack.c.l.b16 %v569
        %v588 = vunpack.c.h.b16 %v569
        %v589 = vunpack.c.l.b16 %v570
        %v590 = vunpack.c.h.b16 %v570
        %v591 = vunpack.c.l.b16 %v571
        %v592 = vunpack.c.h.b16 %v571
        %v593 = vunpack.c.l.b16 %v572
        %v594 = vunpack.c.h.b16 %v572
        %v595 = vunpack.c.l.b16 %v573
        %v596 = vunpack.c.h.b16 %v573
        %v597 = vunpack.c.l.b16 %v574
        %v598 = vunpack.c.h.b16 %v574
        %v599 = vpack.c.b16 %v585, %v583
        %v600 = vpack.c.b16 %v586, %v584
        %v601 = vpack.c.b16 %v589, %v587
        %v602 = vpack.c.b16 %v590, %v588
        %v603 = vpack.c.b16 %v593, %v591
        %v604 = vpack.c.b16 %v594, %v592
        %v605 = vpack.c.b16 %v597, %v595
        %v606 = vpack.c.b16 %v598, %v596
        %v616 = vsel %vm382, %v565, 0
        %v619 = vsel %vm382, %v566, 0
        %621 = vmatprep.subr.bf16.mxu0 %v600
        %622 = vmatpush1.bf16.msra.mxu0 %v599
        %623 = vmatprep.subr.bf16.mxu0 %v602
        %624 = vmatpush1.bf16.msra.mxu0 %v601
        %625 = vmatprep.subr.bf16.mxu0 %v604
        %626 = vmatpush1.bf16.msra.mxu0 %v603
        %627 = vmatprep.subr.bf16.mxu0 %v606
        %628 = vmatpush1.bf16.msra.mxu0 %v605
        %629 = vmatprep.subr.bf16.mxu0 0
        %630 = vmatpush1.bf16.msra.mxu0 0
        %631 = vmatprep.subr.bf16.mxu0 0
        %632 = vmatpush1.bf16.msra.mxu0 0
        %633 = vmatprep.subr.bf16.mxu0 0
        %634 = vmatpush1.bf16.msra.mxu0 0
        %635 = vmatprep.subr.bf16.mxu0 0
        %636 = vmatpush1.bf16.msra.mxu0 0
        %637 = vmatprep.subr.bf16.mxu0 0
        %638 = vmatpush1.bf16.msra.mxu0 0
        %639 = vmatprep.subr.bf16.mxu0 0
        %640 = vmatpush1.bf16.msra.mxu0 0
        %641 = vmatprep.subr.bf16.mxu0 0
        %642 = vmatpush1.bf16.msra.mxu0 0
        %643 = vmatprep.subr.bf16.mxu0 0
        %644 = vmatpush1.bf16.msra.mxu0 0
        %645 = vmatprep.subr.bf16.mxu0 0
        %646 = vmatpush1.bf16.msra.mxu0 0
        %647 = vmatprep.subr.bf16.mxu0 0
        %648 = vmatpush1.bf16.msra.mxu0 0
        %649 = vmatprep.subr.bf16.mxu0 0
        %650 = vmatpush1.bf16.msra.mxu0 0
        %651 = vmatprep.subr.bf16.mxu0 0
        %652 = vmatpush1.bf16.msra.mxu0 0
        %653 = vmatprep.mubr.bf16.mxu0 0
        %654 = vmatmul.mubr.bf16.gmra.mrb[0].mxu0 %v616
        %v655 = vpop.f32.mrb[0].mxu0
        %v656 = vadd.f32 0.0, %v655
        %v657 = vpop.f32.mrb[0].mxu0
        %v658 = vadd.f32 0.0, %v657
        %v659 = vpop.f32.mrb[0].mxu0
        %v660 = vadd.f32 0.0, %v659
        %v661 = vpop.f32.mrb[0].mxu0
        %v662 = vadd.f32 0.0, %v661
        %663 = vmatprep.mubr.bf16.mxu0 0
        %664 = vmatmul.mubr.bf16.gmra.mrb[0].mxu0 %v619
        %v665 = vpop.f32.mrb[0].mxu0
        %v666 = vadd.f32 0.0, %v665
        %v667 = vpop.f32.mrb[0].mxu0
        %v668 = vadd.f32 0.0, %v667
        %v669 = vpop.f32.mrb[0].mxu0
        %v670 = vpop.f32.mrb[0].mxu0
        %671 = vdwg.mxu0
        %672 = vst [vmem:[%s289] sm:$0xff] %v656
        %673 = vst [vmem:[%s289 + $0x8] sm:$0xff] %v658
        %v676 = vcombine.low %v666, %v668
        %v678 = vunpack.c.l.s4 1966171168
        %v679 = vunpack.c.0.s8 %v678
        %v680 = vlaneseq
        %v681 = vshrl.u32 %v680, 7
        %v682 = vsub.s32 %v679, %v681
        %v683 = vrot.slane %v676, %v682
        %v685 = vunpack.c.l.s4 1966171168
        %v686 = vunpack.c.0.s8 %v685
        %v687 = vlaneseq
        %v688 = vshrl.u32 %v687, 7
        %v689 = vsub.s32 %v686, %v688
        %v690 = vrot.slane %v683, %v689
        %v692 = vlaneseq
        %vm693 = vcmp.ge.s32.totalorder %v692, 0
        %vm694 = vcmp.lt.s32.totalorder %v692, 256
        %vm695 = vmand %vm693, %vm694
        %696 = vst.msk [vmem:[%s303] sm:$0x3] %vm695, %v690
        %s697 = scalar_lea.vmem %s289, 16 [#allocation8]
        %698 = vst [vmem:[%s697] sm:$0xff] %v660
        %699 = vst [vmem:[%s697 + $0x8] sm:$0xff] %v662
        %v700 = vcombine.high %v683, %v683
        %v702 = vunpack.c.l.s4 1966171168
        %v703 = vunpack.c.0.s8 %v702
        %v704 = vlaneseq
        %v705 = vshrl.u32 %v704, 7
        %v706 = vsub.s32 %v703, %v705
        %v707 = vrot.slane %v700, %v706
        %s709 = scalar_lea.vmem %s303, 2 [#allocation9]
        %710 = vst.msk [vmem:[%s709] sm:$0x3] %vm695, %v707
        %s711 = sand.u32 %s125, 1
        %s712 = scalar_lea.sflag [#allocation5], %s711
        %s713 = sand.u32 %s125, 1
        %s714 = smul.addr %s713, 32
        %s715 = scalar_lea.vmem [#allocation8], %s714
        %s716 = smul.u32 2, %s28
        %p717 = scmp.lt.s32.totalorder %s716, 3
        %s718 = scalar_select %p717, %s716, 3
        %s719 = smul.addr %s718, 8
        %s720 = scalar_lea.vmem %s5, %s719
        %s721 = sand.u32 %s177, 1
        %s722 = scalar_lea.sflag [#allocation10], %s721
        %s723 = sand.u32 %s177, 1
        %s724 = smul.addr %s723, 4
        %s725 = scalar_lea.vmem [#allocation9], %s724
        // Predicated region
        $region45: #{tpu_custom_call.1} parent=35 // pred_check
          %p726 = pneg %p135
        $region46: #{tpu_custom_call.1} parent=35 // pred_check_branch
          %728 = sbr.rel (%p726) target = $region48
        $region47: #{tpu_custom_call.1} parent=35 // pred_region
          %s729 = smul.u32 2, %s28
          %s731 = ssub.s32 512, 512
          %732 = vsyncadd %s712, %s731
          %s733 = smul.addr %s729, 2
          %s734 = smul.addr %s733, 128
          %s735 = scalar_lea.hbm %s4, %s734
          %s736 = sshll.u32 %s715, 4
          %s737 = int_to_ptr.vmem [resolvable:$true] %s736
          %742 = dma.vmem_to_hbm [thread:$0]  %s737, 512, %s735, %s712, 256, 256, 16
        $region48: #{tpu_custom_call.1} parent=35 // pred_fallthru
          _
        // Predicated region
        $region49: #{tpu_custom_call.1} parent=35 // pred_check
          %p743 = pneg %p161
        $region50: #{tpu_custom_call.1} parent=35 // pred_check_branch
          %745 = sbr.rel (%p743) target = $region52
        $region51: #{tpu_custom_call.1} parent=35 // pred_region
          %s746 = smul.u32 2, %s28
        $region52: #{tpu_custom_call.1} parent=35 // pred_fallthru
          _
        // Predicated region
        $region53: #{tpu_custom_call.1} parent=35 // pred_check
          %p747 = pneg %p187
        $region54: #{tpu_custom_call.1} parent=35 // pred_check_branch
          %749 = sbr.rel (%p747) target = $region56
        $region55: #{tpu_custom_call.1} parent=35 // pred_region
          %s750 = smul.u32 2, %s28
          %s752 = ssub.s32 64, 64
          %753 = vsyncadd %s722, %s752
          %s754 = smul.addr %s750, 2
          %s755 = smul.addr %s754, 16
          %s756 = scalar_lea.hbm %s6, %s755
          %s757 = sshll.u32 %s725, 4
          %s758 = int_to_ptr.vmem [resolvable:$true] %s757
          %763 = dma.vmem_to_hbm [thread:$0]  %s758, 64, %s756, %s722, 32, 32, 2
        $region56: #{tpu_custom_call.1} parent=35 // pred_fallthru
          _
      $region36: #{tpu_custom_call.1} parent=5 // pred_fallthru
        _
      %p764 = scmp.le.s32.totalorder 2, %s23
      // Predicated region
      $region57: #{tpu_custom_call.1} parent=5 // pred_check
        %p765 = pneg %p764
      $region58: #{tpu_custom_call.1} parent=5 // pred_check_branch
        %767 = sbr.rel (%p765) target = $region60
      $region59: #{tpu_custom_call.1} parent=5 // pred_region
        %s768 = ssub.s32 %s23, 2
        // Predicated region
        $region61: #{tpu_custom_call.1} parent=59 // pred_check
          %p769 = pneg %p141
        $region62: #{tpu_custom_call.1} parent=59 // pred_check_branch
          %771 = sbr.rel (%p769) target = $region64
        $region63: #{tpu_custom_call.1} parent=59 // pred_region
          %s772 = sand.u32 %s126, 1
          %s773 = scalar_lea.sflag [#allocation5], %s772
          %s774 = sand.u32 %s126, 1
          %s775 = smul.addr %s774, 32
          %s776 = scalar_lea.vmem [#allocation8], %s775
          %777 = dma.done %s773, 512
        $region64: #{tpu_custom_call.1} parent=59 // pred_fallthru
          _
        // Predicated region
        $region65: #{tpu_custom_call.1} parent=59 // pred_check
          %p778 = pneg %p167
        $region66: #{tpu_custom_call.1} parent=59 // pred_check_branch
          %780 = sbr.rel (%p778) target = $region68
        $region67: #{tpu_custom_call.1} parent=59 // pred_region
          %s781 = smul.u32 2, %s29
          %p782 = scmp.lt.s32.totalorder %s781, 3
          %s783 = scalar_select %p782, %s781, 3
          %s784 = smul.addr %s783, 8
          %s785 = scalar_lea.vmem %s5, %s784
        $region68: #{tpu_custom_call.1} parent=59 // pred_fallthru
          _
        // Predicated region
        $region69: #{tpu_custom_call.1} parent=59 // pred_check
          %p786 = pneg %p193
        $region70: #{tpu_custom_call.1} parent=59 // pred_check_branch
          %788 = sbr.rel (%p786) target = $region72
        $region71: #{tpu_custom_call.1} parent=59 // pred_region
          %s789 = sand.u32 %s178, 1
          %s790 = scalar_lea.sflag [#allocation10], %s789
          %s791 = sand.u32 %s178, 1
          %s792 = smul.addr %s791, 4
          %s793 = scalar_lea.vmem [#allocation9], %s792
          %794 = dma.done %s790, 64
        $region72: #{tpu_custom_call.1} parent=59 // pred_fallthru
          _
      $region60: #{tpu_custom_call.1} parent=5 // pred_fallthru
        _
    $region6: #{tpu_custom_call.1} parent=1 // loop_footer
      %s27 = sadd.s32 1, %s23
    $region7: #{tpu_custom_call.1} parent=1 // loop_footer_branch
      %22 = sbr.rel target = $region3
    $region8: #{tpu_custom_call.1} parent=1 // loop_exit
      _
    %795 = vsyncpa [#allocation4], 1
    %s796 = scalar_lea.sflag [#allocation4], 1
    %797 = vsyncpa %s796, 1
    %798 = vsyncpa [#allocation7], 1
    %799 = vsyncpa [#allocation5], 1
    %s800 = scalar_lea.sflag [#allocation5], 1
    %801 = vsyncpa %s800, 1
    %802 = vsyncpa [#allocation10], 1
    %s803 = scalar_lea.sflag [#allocation10], 1
    %804 = vsyncpa %s803, 1

</llo_original>
